<compile_context>
chip_gen: v5e
topology: v5e:2x2
jax: 0.10.0
libtpu: 0.0.40
codegen_flags: <defaults>
</compile_context>

<pallas_src>
import functools

import jax
import jax.numpy as jnp
from jax.experimental import pallas as pl
from jax.experimental.pallas import tpu as pltpu

BN_EPS = 1e-5
FC_TN = 512                    # lane-dense FC tile along N
FC1_PAD_OUT = 8192             # 8024 rounded up to a multiple of FC_TN


# --------------------------- Pallas kernels ---------------------------------

def _mm_bn_kernel(x_ref, w_ref, scale_ref, shift_ref, o_ref, *, relu):
    """(tm,K) @ (K,tn) on the MXU + fused BatchNorm affine (+ optional ReLU)."""
    acc = jnp.dot(x_ref[...], w_ref[...], preferred_element_type=jnp.float32)
    y = acc * scale_ref[...] + shift_ref[...]
    if relu:
        y = jnp.maximum(y, 0.0)
    o_ref[...] = y.astype(o_ref.dtype)


def _mm_bn_skip_kernel(x_ref, w_ref, scale_ref, shift_ref, skip_ref, o_ref, *,
                       relu):
    """Same as above but with the residual skip tensor fused into the epilogue."""
    acc = jnp.dot(x_ref[...], w_ref[...], preferred_element_type=jnp.float32)
    y = acc * scale_ref[...] + shift_ref[...] + skip_ref[...].astype(jnp.float32)
    if relu:
        y = jnp.maximum(y, 0.0)
    o_ref[...] = y.astype(o_ref.dtype)


def matmul_bn(x, w, scale, shift, *, relu, skip=None,
              out_dtype=jnp.bfloat16, tm=None, tn=None):
    """y = maybe_relu((x @ w) * scale + shift [+ skip]).

    x: (M, K) bf16, w: (K, N) bf16 (pre-packed), scale/shift: (1, N) f32,
    skip: optional (M, N) bf16. 2-D grid over (M, N); K is consumed whole.
    """
    M, K = x.shape
    K2, N = w.shape
    assert K == K2, (K, K2)
    if tm is None:
        tm = M if M <= 512 else 512
    if tn is None:
        tn = N
    assert N % tn == 0, (N, tn)
    grid = (pl.cdiv(M, tm), N // tn)

    in_specs = [
        pl.BlockSpec((tm, K), lambda i, j: (i, 0)),
        pl.BlockSpec((K, tn), lambda i, j: (0, j)),
        pl.BlockSpec((1, tn), lambda i, j: (0, j)),
        pl.BlockSpec((1, tn), lambda i, j: (0, j)),
    ]
    args = [x, w, scale, shift]
    if skip is not None:
        in_specs.append(pl.BlockSpec((tm, tn), lambda i, j: (i, j)))
        args.append(skip)
        kern = functools.partial(_mm_bn_skip_kernel, relu=relu)
    else:
        kern = functools.partial(_mm_bn_kernel, relu=relu)

    return pl.pallas_call(
        kern,
        out_shape=jax.ShapeDtypeStruct((M, N), out_dtype),
        grid=grid,
        in_specs=in_specs,
        out_specs=pl.BlockSpec((tm, tn), lambda i, j: (i, j)),
        compiler_params=pltpu.CompilerParams(
            dimension_semantics=("parallel", "parallel"),
            vmem_limit_bytes=48 * 1024 * 1024),
    )(*args)


def _maxpool3_kernel(x_ref, o_ref):
    """Dense (stride-1) 3x3 max over the spatial dims of one batch element."""
    x = x_ref[0]                       # (H, W, C)
    H, W, _ = x.shape
    m = x[0:H - 2, 0:W - 2, :]
    for dy in range(3):
        for dx in range(3):
            m = jnp.maximum(m, x[dy:dy + H - 2, dx:dx + W - 2, :])
    o_ref[0] = m


def maxpool_3x3_s2(x):
    """nn.MaxPool2d(kernel_size=3, stride=2) on NHWC (bf16)."""
    N, H, W, C = x.shape
    Ho, Wo = (H - 3) // 2 + 1, (W - 3) // 2 + 1
    dense = pl.pallas_call(
        _maxpool3_kernel,
        out_shape=jax.ShapeDtypeStruct((N, H - 2, W - 2, C), x.dtype),
        grid=(N,),
        in_specs=[pl.BlockSpec((1, H, W, C), lambda n: (n, 0, 0, 0))],
        out_specs=pl.BlockSpec((1, H - 2, W - 2, C), lambda n: (n, 0, 0, 0)),
        compiler_params=pltpu.CompilerParams(
            dimension_semantics=("parallel",)),
    )(x)
    return dense[:, ::2, ::2, :][:, :Ho, :Wo, :]


# --------------------------- layer wrappers ----------------------------------

def _im2col(x, k, stride, pad):
    """NHWC -> (N*Ho*Wo, k*k*Cin) patches (ordering: dy, dx, cin), bf16."""
    N, H, W, C = x.shape
    xp = jnp.pad(x, ((0, 0), (pad, pad), (pad, pad), (0, 0)))
    Ho = (H + 2 * pad - k) // stride + 1
    Wo = (W + 2 * pad - k) // stride + 1
    cols = []
    for dy in range(k):
        for dx in range(k):
            cols.append(xp[:, dy:dy + stride * (Ho - 1) + 1:stride,
                           dx:dx + stride * (Wo - 1) + 1:stride, :])
    p = jnp.stack(cols, axis=3)                    # (N, Ho, Wo, k*k, C)
    return p.reshape(N * Ho * Wo, k * k * C), (N, Ho, Wo)


def conv_bn(x, p, stride, pad, relu, skip=None):
    """Conv2d(bias=True) + BatchNorm2d (+ optional residual add) (+ optional
    ReLU), all fused into the Pallas matmul epilogue. Weights pre-packed."""
    k = p["k"]
    cout = p["w"].shape[1]
    cols, (N, Ho, Wo) = _im2col(x, k, stride, pad)
    if skip is not None:
        skip = skip.reshape(N * Ho * Wo, cout)     # NHWC row order == cols rows
    y = matmul_bn(cols, p["w"], p["scale"], p["shift"],
                  relu=relu, skip=skip, out_dtype=jnp.bfloat16)
    return y.reshape(N, Ho, Wo, cout)


def linear_bn(x, p, out_dtype=jnp.bfloat16):
    """Linear(bias=False) + BatchNorm1d + ReLU fused into the matmul epilogue."""
    return matmul_bn(x, p["w"], p["scale"], p["shift"],
                     relu=True, out_dtype=out_dtype, tn=FC_TN)


# --------------------------- parameters (pre-packed) -------------------------

def _bn_params(key, c):
    k1, k2, k3 = jax.random.split(key, 3)
    gamma = 1.0 + 0.1 * jax.random.normal(k1, (c,), jnp.float32)
    beta = 0.1 * jax.random.normal(k2, (c,), jnp.float32)
    mean = 0.1 * jax.random.normal(k3, (c,), jnp.float32)
    var = jnp.ones((c,), jnp.float32)
    return gamma, beta, mean, var


def _conv_pack(key, cin, cout, k):
    """Conv weight in (k*k*cin, cout) bf16 plus fused BN scale/shift (f32)."""
    kw, kb, kbn = jax.random.split(key, 3)
    std = (2.0 / (cin * k * k)) ** 0.5
    w = std * jax.random.normal(kw, (cout, cin, k, k), jnp.float32)  # torch layout
    b = 0.01 * jax.random.normal(kb, (cout,), jnp.float32)
    gamma, beta, mean, var = _bn_params(kbn, cout)
    s = gamma / jnp.sqrt(var + BN_EPS)
    shift = (b - mean) * s + beta                   # BN folded with conv bias
    wmat = jnp.transpose(w, (2, 3, 1, 0)).reshape(k * k * cin, cout)
    return dict(w=wmat.astype(jnp.bfloat16),
                scale=s[None, :], shift=shift[None, :], k=k)


def _linear_pack(key, fin, fout, pad_in=0, pad_out=0):
    """Linear weight in (fin[+pad_in], fout[+pad_out]) bf16 + fused BN affine.

    Padded rows/cols are zero, so padded activation columns are exactly 0 and
    padded weight rows contribute nothing -> numerics unchanged."""
    kw, kbn = jax.random.split(key, 2)
    std = (2.0 / fin) ** 0.5
    w = std * jax.random.normal(kw, (fout, fin), jnp.float32)        # torch layout
    gamma, beta, mean, var = _bn_params(kbn, fout)
    s = gamma / jnp.sqrt(var + BN_EPS)
    shift = beta - mean * s
    wmat = jnp.pad(w.T, ((0, pad_in), (0, pad_out)))
    s = jnp.pad(s, (0, pad_out))
    shift = jnp.pad(shift, (0, pad_out))
    return dict(w=wmat.astype(jnp.bfloat16),
                scale=s[None, :], shift=shift[None, :])


def init_params(key):
    keys = jax.random.split(key, 14)
    return dict(
        conv1=_conv_pack(keys[0], 3, 64, 7),
        res1_1=_conv_pack(keys[1], 64, 128, 5),
        res2_1=_conv_pack(keys[2], 128, 128, 3),
        res3_1=_conv_pack(keys[3], 128, 64, 5),
        conv2=_conv_pack(keys[4], 64, 192, 5),
        conv3=_conv_pack(keys[5], 192, 384, 3),
        res1_2=_conv_pack(keys[6], 384, 256, 3),
        res2_2=_conv_pack(keys[7], 256, 384, 3),
        res3_2=_conv_pack(keys[8], 384, 384, 3),
        conv4=_conv_pack(keys[9], 384, 256, 3),
        conv5=_conv_pack(keys[10], 256, 256, 3),
        # fc1 output padded 8024 -> 8192; fc2 input padded to match.
        fc1=_linear_pack(keys[11], 3 * 3 * 256, 8024,
                         pad_out=FC1_PAD_OUT - 8024),
        fc2=_linear_pack(keys[12], 8024, 4096,
                         pad_in=FC1_PAD_OUT - 8024),
        fc3=_linear_pack(keys[13], 4096, 4096))


# --------------------------- forward ------------------------------------------

def alexnet_feature_forward(x_nchw, p):
    """Default forward (out_feat_keys=None -> returns the 'fc_block' feature)."""
    x = jnp.transpose(x_nchw, (0, 2, 3, 1)).astype(jnp.bfloat16)  # NCHW -> NHWC
    # TODO(synk): BatchNorm is evaluated in inference mode (running stats);
    # training-mode batch statistics are not computed here.
    x1 = conv_bn(x, p["conv1"], stride=2, pad=2, relu=True)      # conv1
    f = conv_bn(x1, p["res1_1"], 1, 2, True)                     # res1_1
    f = conv_bn(f, p["res2_1"], 1, 1, True)                      # res2_1
    f = conv_bn(f, p["res3_1"], 1, 2, True, skip=x1)             # res3_1 + res1 (fused add+ReLU)
    f = maxpool_3x3_s2(f)                                        # pool1
    f = conv_bn(f, p["conv2"], 1, 2, True)                       # conv2
    pool2_ = f = maxpool_3x3_s2(f)                               # pool2
    x2 = f = conv_bn(f, p["conv3"], 1, 1, True)                  # conv3
    f = conv_bn(f, p["res1_2"], 1, 1, True)                      # res1_2
    f = conv_bn(f, p["res2_2"], 1, 1, True)                      # res2_2
    f = conv_bn(f, p["res3_2"], 1, 1, True, skip=x2)             # res3_2 + res2 (fused add+ReLU)
    f = conv_bn(f, p["conv4"], 1, 1, True)                       # conv4
    # NOTE: the PyTorch forward builds feat_cat13 = cat((conv4, pool2_), dim=1)
    # but never uses it for any returned feature -> dead code, skipped.
    del pool2_
    f = conv_bn(f, p["conv5"], 1, 1, True)                       # conv5
    f = maxpool_3x3_s2(f)                                        # pool5 -> (N, 3, 3, 256)
    n = f.shape[0]
    # Flatten in PyTorch's NCHW order to match Flatten() semantics.
    f = jnp.transpose(f, (0, 3, 1, 2)).reshape(n, -1)            # (N, 2304)
    f = linear_bn(f, p["fc1"])                                   # fc_block (N, 8192; cols >=8024 are 0)
    f = linear_bn(f, p["fc2"])                                   # (N, 4096)
    f = linear_bn(f, p["fc3"], out_dtype=jnp.float32)            # (N, 4096)
    return f


if __name__ == "__main__":
    key = jax.random.PRNGKey(0)
    kp, kx = jax.random.split(key)
    params = init_params(kp)
    # Spatial size 64 is the smallest "small" input consistent with the module:
    # it makes pool5 produce 3x3x256 = 2304 features, matching Linear(3*3*256, 8024).
    x = jax.random.normal(kx, (2, 3, 64, 64), jnp.float32)
    out = alexnet_feature_forward(x, params)
    out = jax.block_until_ready(out)
    assert out.shape == (2, 4096), out.shape
    assert bool(jnp.all(jnp.isfinite(out)))
    print("KERNEL_OK")
</pallas_src>

<mosaic_0001>
module attributes {stable_mosaic.version = 11 : i64} {
  func.func @_mm_bn_kernel(%arg0: i32, %arg1: i32, %arg2: memref<512x147xbf16, #tpu.memory_space<vmem>>, %arg3: memref<147x64xbf16, #tpu.memory_space<vmem>>, %arg4: memref<1x64xf32, #tpu.memory_space<vmem>>, %arg5: memref<1x64xf32, #tpu.memory_space<vmem>>, %arg6: memref<512x64xbf16, #tpu.memory_space<vmem>>) attributes {dimension_semantics = [#tpu.dimension_semantics<parallel>, #tpu.dimension_semantics<parallel>], iteration_bounds = array<i64: 4, 1>, scalar_prefetch = 0 : i64, scratch_operands = 0 : i64, tpu.core_type = #tpu.core_type<tc>, window_params = [{transform_indices = @transform_0, window_bounds = array<i64: 512, 147>}, {transform_indices = @transform_1, window_bounds = array<i64: 147, 64>}, {transform_indices = @transform_2, window_bounds = array<i64: 1, 64>}, {transform_indices = @transform_3, window_bounds = array<i64: 1, 64>}, {transform_indices = @transform_4, window_bounds = array<i64: 512, 64>}]} {
    %c0 = arith.constant 0 : index
    %c0_0 = arith.constant 0 : index
    %0 = vector.load %arg2[%c0, %c0_0] : memref<512x147xbf16, #tpu.memory_space<vmem>>, vector<512x147xbf16>
    %c0_1 = arith.constant 0 : index
    %c0_2 = arith.constant 0 : index
    %1 = vector.load %arg3[%c0_1, %c0_2] : memref<147x64xbf16, #tpu.memory_space<vmem>>, vector<147x64xbf16>
    %cst = arith.constant dense<0.000000e+00> : vector<512x64xf32>
    %2 = tpu.matmul %0, %1, %cst {dimension_numbers = #tpu.dot_dimension_numbers<[1], [0], [0], [1], [0, 0, 1, 1], [], []>} : vector<512x147xbf16>, vector<147x64xbf16>, vector<512x64xf32> -> vector<512x64xf32>
    %c0_3 = arith.constant 0 : index
    %c0_4 = arith.constant 0 : index
    %3 = vector.load %arg4[%c0_3, %c0_4] : memref<1x64xf32, #tpu.memory_space<vmem>>, vector<1x64xf32>
    %4 = vector.broadcast %3 : vector<1x64xf32> to vector<512x64xf32>
    %5 = arith.mulf %2, %4 : vector<512x64xf32>
    %c0_5 = arith.constant 0 : index
    %c0_6 = arith.constant 0 : index
    %6 = vector.load %arg5[%c0_5, %c0_6] : memref<1x64xf32, #tpu.memory_space<vmem>>, vector<1x64xf32>
    %7 = vector.broadcast %6 : vector<1x64xf32> to vector<512x64xf32>
    %8 = arith.addf %5, %7 : vector<512x64xf32>
    %cst_7 = arith.constant 0.000000e+00 : f32
    %9 = vector.broadcast %cst_7 : f32 to vector<512x64xf32>
    %10 = arith.maximumf %8, %9 : vector<512x64xf32>
    %11 = arith.truncf %10 : vector<512x64xf32> to vector<512x64xbf16>
    %c0_8 = arith.constant 0 : index
    %c0_9 = arith.constant 0 : index
    %12 = vector.load %arg6[%c0_8, %c0_9] : memref<512x64xbf16, #tpu.memory_space<vmem>>, vector<512x64xbf16>
    tpu.vector_store %arg6[%c0_8, %c0_9], %11 {strides = array<i32>} : memref<512x64xbf16, #tpu.memory_space<vmem>>, vector<512x64xbf16>,
    return
  }
  func.func @transform_0(%arg0: i32, %arg1: i32) -> (i32, i32) {
    %c0_i32 = arith.constant 0 : i32
    %c0_i32_0 = arith.constant 0 : i32
    return %arg0, %c0_i32 : i32, i32
  }
  func.func @transform_1(%arg0: i32, %arg1: i32) -> (i32, i32) {
    %c0_i32 = arith.constant 0 : i32
    %c0_i32_0 = arith.constant 0 : i32
    return %c0_i32, %arg1 : i32, i32
  }
  func.func @transform_2(%arg0: i32, %arg1: i32) -> (i32, i32) {
    %c0_i32 = arith.constant 0 : i32
    %c0_i32_0 = arith.constant 0 : i32
    return %c0_i32, %arg1 : i32, i32
  }
  func.func @transform_3(%arg0: i32, %arg1: i32) -> (i32, i32) {
    %c0_i32 = arith.constant 0 : i32
    %c0_i32_0 = arith.constant 0 : i32
    return %c0_i32, %arg1 : i32, i32
  }
  func.func @transform_4(%arg0: i32, %arg1: i32) -> (i32, i32) {
    %c0_i32 = arith.constant 0 : i32
    return %arg0, %arg1 : i32, i32
  }
}

</mosaic_0001>

<llo_original>
// kernel: tpu_custom_call.1
$region0: #{tpu_custom_call.1}
  #allocation0 [shape = 'u32[]', space=smem, size = 0x4, offset = 0x4, fixed_abs, tag = 'smem constant byte address 0x4 - core index']
  #allocation1 [shape = 'u32[72,128]{1,0:T(1,128)}', space=vmem, size = 0x9000, scoped, tag = 'internal scratch']
  %s0 = inlined_call_operand.vmem [shape: bf16[1922,147], index: 0, kind: input, shape index: {}]
  %s1 = inlined_call_operand.vmem [shape: bf16[147,64], index: 1, kind: input, shape index: {}]
  %s2 = inlined_call_operand.vmem [shape: f32[1,64], index: 2, kind: input, shape index: {}]
  %s3 = inlined_call_operand.vmem [shape: f32[1,64], index: 3, kind: input, shape index: {}]
  %s4 = inlined_call_operand.vmem [shape: bf16[1922,64], index: 4, kind: output, shape index: {}]
  %s5 = sld [smem:[#allocation0]]
  $region93: #{tpu_custom_call.1} parent=0
    _
  %s7 = ssub.s32 1, %s5
  %s8 = scalar_select 0, %s7, %s5
  $region1: #{tpu_custom_call.1} parent=0
    #allocation2 [shape = 'u8[262144]{0}', space=vmem, size = 0x40000, scoped, tag = 'output window, operand 0']
    loop: start=0, step=1, limit=6
    $region2: #{tpu_custom_call.1} parent=1 // loop_pre_header
      _
    $region3: #{tpu_custom_call.1} parent=1 // loop_header
      %s10 = sphi 0, %s14
      %p11 = scmp.ge.s32.totalorder %s10, 6
      %s17 = sphi 0, %s29
      %s18 = sphi 0, %s25
      %s19 = sphi 0, %s17
      %s20 = sphi 0, %s18
      %s21 = sphi 0, %s19
      %s22 = sphi 0, %s20
      %s32 = sphi 0, %s34
      %s35 = sphi 0, %s32
      %s36 = sphi 0, %s35
      %s52 = sphi 0, %s36
      %s58 = sphi 0, %s60
      %s61 = sphi 0, %s58
      %s62 = sphi 0, %s61
      %s78 = sphi 0, %s62
      %s84 = sphi 0, %s86
      %s87 = sphi 0, %s84
      %s88 = sphi 0, %s87
      %s104 = sphi 0, %s88
      %s110 = sphi 0, %s112
      %s113 = sphi 0, %s110
      %s114 = sphi 0, %s113
      %s130 = sphi 0, %s114
      %s138 = sphi 0, %s140
      %s141 = sphi 0, %s138
      %s142 = sphi 0, %s141
      %s158 = sphi 0, %s142
    $region4: #{tpu_custom_call.1} parent=1 // loop_header_branch
      %13 = sbr.rel (%p11) target = $region8
    $region5: #{tpu_custom_call.1} parent=1 // loop_body
      %s15 = ssub.s32 %s10, 1
      %s16 = ssub.s32 %s10, 2
      %s23 = sadd.s32 1, %s18
      %p24 = scmp.ge.s32.totalorder %s23, 1
      %s25 = scalar_select %p24, 0, %s23
      %s26 = sadd.s32 1, %s17
      %s27 = scalar_select %p24, %s26, %s17
      %p28 = scmp.ge.s32.totalorder %s27, 4
      %s29 = scalar_select %p28, 0, %s27
      %s30 = ssub.s32 %s17, %s29
      %p31 = scmp.eq.s32.totalorder %s30, 0
      %s33 = sadd.s32 %s32, 1
      %s34 = scalar_select %p31, %s32, %s33
      %p37 = pneg %p31
      %p38 = scmp.eq.s32.totalorder %s10, 3
      %p39 = por %p37, %p38
      %p40 = scmp.ne.s32.totalorder %s32, %s35
      %p41 = scmp.eq.s32.totalorder %s10, 0
      %p42 = por %p40, %p41
      %p43 = scmp.ne.s32.totalorder %s32, %s35
      %p44 = scmp.eq.s32.totalorder %s15, 3
      %p45 = por %p43, %p44
      %p46 = scmp.ne.s32.totalorder %s35, %s36
      %p47 = scmp.eq.s32.totalorder %s15, 0
      %p48 = por %p46, %p47
      %p49 = scmp.ne.s32.totalorder %s35, %s36
      %p50 = scmp.eq.s32.totalorder %s16, 3
      %p51 = por %p49, %p50
      %p53 = scmp.ne.s32.totalorder %s36, %s52
      %p54 = scmp.eq.s32.totalorder %s16, 0
      %p55 = por %p53, %p54
      %s56 = ssub.s32 %s18, %s25
      %p57 = scmp.eq.s32.totalorder %s56, 0
      %s59 = sadd.s32 %s58, 1
      %s60 = scalar_select %p57, %s58, %s59
      %p63 = pneg %p57
      %p64 = scmp.eq.s32.totalorder %s10, 3
      %p65 = por %p63, %p64
      %p66 = scmp.ne.s32.totalorder %s58, %s61
      %p67 = scmp.eq.s32.totalorder %s10, 0
      %p68 = por %p66, %p67
      %p69 = scmp.ne.s32.totalorder %s58, %s61
      %p70 = scmp.eq.s32.totalorder %s15, 3
      %p71 = por %p69, %p70
      %p72 = scmp.ne.s32.totalorder %s61, %s62
      %p73 = scmp.eq.s32.totalorder %s15, 0
      %p74 = por %p72, %p73
      %p75 = scmp.ne.s32.totalorder %s61, %s62
      %p76 = scmp.eq.s32.totalorder %s16, 3
      %p77 = por %p75, %p76
      %p79 = scmp.ne.s32.totalorder %s62, %s78
      %p80 = scmp.eq.s32.totalorder %s16, 0
      %p81 = por %p79, %p80
      %s82 = ssub.s32 %s18, %s25
      %p83 = scmp.eq.s32.totalorder %s82, 0
      %s85 = sadd.s32 %s84, 1
      %s86 = scalar_select %p83, %s84, %s85
      %p89 = pneg %p83
      %p90 = scmp.eq.s32.totalorder %s10, 3
      %p91 = por %p89, %p90
      %p92 = scmp.ne.s32.totalorder %s84, %s87
      %p93 = scmp.eq.s32.totalorder %s10, 0
      %p94 = por %p92, %p93
      %p95 = scmp.ne.s32.totalorder %s84, %s87
      %p96 = scmp.eq.s32.totalorder %s15, 3
      %p97 = por %p95, %p96
      %p98 = scmp.ne.s32.totalorder %s87, %s88
      %p99 = scmp.eq.s32.totalorder %s15, 0
      %p100 = por %p98, %p99
      %p101 = scmp.ne.s32.totalorder %s87, %s88
      %p102 = scmp.eq.s32.totalorder %s16, 3
      %p103 = por %p101, %p102
      %p105 = scmp.ne.s32.totalorder %s88, %s104
      %p106 = scmp.eq.s32.totalorder %s16, 0
      %p107 = por %p105, %p106
      %s108 = ssub.s32 %s18, %s25
      %p109 = scmp.eq.s32.totalorder %s108, 0
      %s111 = sadd.s32 %s110, 1
      %s112 = scalar_select %p109, %s110, %s111
      %p115 = pneg %p109
      %p116 = scmp.eq.s32.totalorder %s10, 3
      %p117 = por %p115, %p116
      %p118 = scmp.ne.s32.totalorder %s110, %s113
      %p119 = scmp.eq.s32.totalorder %s10, 0
      %p120 = por %p118, %p119
      %p121 = scmp.ne.s32.totalorder %s110, %s113
      %p122 = scmp.eq.s32.totalorder %s15, 3
      %p123 = por %p121, %p122
      %p124 = scmp.ne.s32.totalorder %s113, %s114
      %p125 = scmp.eq.s32.totalorder %s15, 0
      %p126 = por %p124, %p125
      %p127 = scmp.ne.s32.totalorder %s113, %s114
      %p128 = scmp.eq.s32.totalorder %s16, 3
      %p129 = por %p127, %p128
      %p131 = scmp.ne.s32.totalorder %s114, %s130
      %p132 = scmp.eq.s32.totalorder %s16, 0
      %p133 = por %p131, %p132
      %s134 = ssub.s32 %s17, %s29
      %s135 = ssub.s32 %s18, %s25
      %s136 = sor.u32 %s134, %s135
      %p137 = scmp.eq.s32.totalorder %s136, 0
      %s139 = sadd.s32 %s138, 1
      %s140 = scalar_select %p137, %s138, %s139
      %p143 = pneg %p137
      %p144 = scmp.eq.s32.totalorder %s10, 3
      %p145 = por %p143, %p144
      %p146 = scmp.ne.s32.totalorder %s138, %s141
      %p147 = scmp.eq.s32.totalorder %s10, 0
      %p148 = por %p146, %p147
      %p149 = scmp.ne.s32.totalorder %s138, %s141
      %p150 = scmp.eq.s32.totalorder %s15, 3
      %p151 = por %p149, %p150
      %p152 = scmp.ne.s32.totalorder %s141, %s142
      %p153 = scmp.eq.s32.totalorder %s15, 0
      %p154 = por %p152, %p153
      %p155 = scmp.ne.s32.totalorder %s141, %s142
      %p156 = scmp.eq.s32.totalorder %s16, 3
      %p157 = por %p155, %p156
      %p159 = scmp.ne.s32.totalorder %s142, %s158
      %p160 = scmp.eq.s32.totalorder %s16, 0
      %p161 = por %p159, %p160
      %p162 = scmp.le.s32.totalorder 1, %s10
      %p163 = scmp.lt.s32.totalorder %s10, 5
      %p164 = pnand %p162, %p163
      %p165 = pneg %p164
      // Predicated region
      $region9: #{tpu_custom_call.1} parent=5 // pred_check
        _
      $region10: #{tpu_custom_call.1} parent=5 // pred_check_branch
        %167 = sbr.rel (%p164) target = $region12
      $region11: #{tpu_custom_call.1} parent=5 // pred_region
        %s168 = ssub.s32 %s10, 1
        // Predicated region
        $region13: #{tpu_custom_call.1} parent=11 // pred_check
          %p169 = pneg %p74
        $region14: #{tpu_custom_call.1} parent=11 // pred_check_branch
          %171 = sbr.rel (%p169) target = $region16
        $region15: #{tpu_custom_call.1} parent=11 // pred_region
          %p172 = scmp.lt.s32.totalorder %s20, 0
          %s173 = scalar_select %p172, %s20, 0
          %s174 = smul.addr %s173, 4
          %s175 = scalar_lea.vmem %s1, %s174
        $region16: #{tpu_custom_call.1} parent=11 // pred_fallthru
          _
        // Predicated region
        $region17: #{tpu_custom_call.1} parent=11 // pred_check
          %p176 = pneg %p100
        $region18: #{tpu_custom_call.1} parent=11 // pred_check_branch
          %178 = sbr.rel (%p176) target = $region20
        $region19: #{tpu_custom_call.1} parent=11 // pred_region
          %p179 = scmp.lt.s32.totalorder %s20, 0
          %s180 = scalar_select %p179, %s20, 0
          %s181 = scalar_lea.vmem %s2, %s180
        $region20: #{tpu_custom_call.1} parent=11 // pred_fallthru
          _
        // Predicated region
        $region21: #{tpu_custom_call.1} parent=11 // pred_check
          %p182 = pneg %p126
        $region22: #{tpu_custom_call.1} parent=11 // pred_check_branch
          %184 = sbr.rel (%p182) target = $region24
        $region23: #{tpu_custom_call.1} parent=11 // pred_region
          %p185 = scmp.lt.s32.totalorder %s20, 0
          %s186 = scalar_select %p185, %s20, 0
          %s187 = scalar_lea.vmem %s3, %s186
        $region24: #{tpu_custom_call.1} parent=11 // pred_fallthru
          _
      $region12: #{tpu_custom_call.1} parent=5 // pred_fallthru
        _
      %p188 = scmp.lt.s32.totalorder %s10, 4
      // Predicated region
      $region25: #{tpu_custom_call.1} parent=5 // pred_check
        %p189 = pneg %p188
      $region26: #{tpu_custom_call.1} parent=5 // pred_check_branch
        %191 = sbr.rel (%p189) target = $region28
      $region27: #{tpu_custom_call.1} parent=5 // pred_region
        // Predicated region
        $region29: #{tpu_custom_call.1} parent=27 // pred_check
          %p192 = pneg %p42
        $region30: #{tpu_custom_call.1} parent=27 // pred_check_branch
          %194 = sbr.rel (%p192) target = $region32
        $region31: #{tpu_custom_call.1} parent=27 // pred_region
          %s195 = smul.u32 64, %s17
          %s196 = ssub.s32 241, %s195
          %p197 = scmp.lt.s32.totalorder %s196, 64
          %s198 = scalar_select %p197, %s196, 64
          %s199 = smul.u32 4, %s198
          %s200 = smul.u32 %s199, 2
          %p201 = scmp.lt.s32.totalorder %s195, 240
          %s202 = scalar_select %p201, %s195, 240
          %s203 = smul.addr %s202, 2
          %s204 = smul.addr %s203, 4
          %s205 = scalar_lea.vmem %s0, %s204
          %s206 = smul.u32 64, %s17
          %s207 = ssub.s32 241, %s206
          %p208 = scmp.lt.s32.totalorder %s207, 64
          %s209 = scalar_select %p208, %s207, 64
          %s210 = smul.u32 4, %s209
          %s211 = smul.u32 %s210, 2
        $region32: #{tpu_custom_call.1} parent=27 // pred_fallthru
          _
      $region28: #{tpu_custom_call.1} parent=5 // pred_fallthru
        _
      %p212 = scmp.le.s32.totalorder 1, %s10
      %p213 = scmp.lt.s32.totalorder %s10, 5
      %p214 = pnand %p212, %p213
      %p215 = pneg %p214
      // Predicated region
      $region33: #{tpu_custom_call.1} parent=5 // pred_check
        _
      $region34: #{tpu_custom_call.1} parent=5 // pred_check_branch
        %217 = sbr.rel (%p214) target = $region36
      $region35: #{tpu_custom_call.1} parent=5 // pred_region
        %s218 = ssub.s32 %s10, 1
        %s219 = smul.u32 64, %s19
        %s220 = ssub.s32 241, %s219
        %p221 = scmp.lt.s32.totalorder %s220, 64
        %s222 = scalar_select %p221, %s220, 64
        %s223 = smul.u32 4, %s222
        %s224 = smul.u32 %s223, 2
        %p225 = scmp.lt.s32.totalorder %s219, 240
        %s226 = scalar_select %p225, %s219, 240
        %s227 = smul.addr %s226, 2
        %s228 = smul.addr %s227, 4
        %s229 = scalar_lea.vmem %s0, %s228
        %p230 = pneg %p48
        %p231 = pneg %p45
        %p232 = scmp.lt.s32.totalorder %s20, 0
        %s233 = scalar_select %p232, %s20, 0
        %s234 = smul.addr %s233, 4
        %s235 = scalar_lea.vmem %s1, %s234
        %p236 = pneg %p74
        %p237 = pneg %p71
        %p238 = scmp.lt.s32.totalorder %s20, 0
        %s239 = scalar_select %p238, %s20, 0
        %s240 = scalar_lea.vmem %s2, %s239
        %p241 = pneg %p100
        %p242 = pneg %p97
        %p243 = scmp.lt.s32.totalorder %s20, 0
        %s244 = scalar_select %p243, %s20, 0
        %s245 = scalar_lea.vmem %s3, %s244
        %p246 = pneg %p126
        %p247 = pneg %p123
        %p248 = pneg %p154
        %p249 = pneg %p151
        %s250 = sand.u32 %s141, 1
        %s251 = sand.u32 %s141, 1
        %s252 = smul.addr %s251, 256
        %s253 = scalar_lea.vmem [#allocation2], %s252
        %s254 = smul.u32 64, %s19
        %s255 = ssub.s32 241, %s254
        %p256 = scmp.lt.s32.totalorder %s255, 64
        %s257 = scalar_select %p256, %s255, 64
        %s258 = smul.u32 4, %s257
        %s259 = smul.u32 %s258, 2
        %p260 = scmp.lt.s32.totalorder %s254, 240
        %s261 = scalar_select %p260, %s254, 240
        %s262 = smul.addr %s261, 2
        %s263 = smul.addr %s262, 4
        %s264 = scalar_lea.vmem %s0, %s263
        %s265 = smul.u32 64, %s19
        %s266 = ssub.s32 241, %s265
        %p267 = scmp.lt.s32.totalorder %s266, 64
        %s268 = scalar_select %p267, %s266, 64
        %s269 = smul.u32 4, %s268
        %s270 = smul.u32 %s269, 2
        %p271 = scmp.lt.s32.totalorder %s20, 0
        %s272 = scalar_select %p271, %s20, 0
        %s273 = smul.addr %s272, 4
        %s274 = scalar_lea.vmem %s1, %s273
        %p275 = scmp.lt.s32.totalorder %s20, 0
        %s276 = scalar_select %p275, %s20, 0
        %s277 = scalar_lea.vmem %s2, %s276
        %p278 = scmp.lt.s32.totalorder %s20, 0
        %s279 = scalar_select %p278, %s20, 0
        %s280 = scalar_lea.vmem %s3, %s279
        %s281 = smul.u32 64, %s19
        %s282 = ssub.s32 241, %s281
        %p283 = scmp.lt.s32.totalorder %s282, 64
        %s284 = scalar_select %p283, %s282, 64
        %s285 = smul.u32 4, %s284
        %v287 = vld [vmem:[%s264] sm:$0xff]
        %v288 = vld [vmem:[%s264 + $0x8] sm:$0xff]
        %v289 = vld [vmem:[%s264 + $0x10] sm:$0xff]
        %v290 = vld [vmem:[%s264 + $0x18] sm:$0xff]
        %v291 = vld [vmem:[%s264 + $0x20] sm:$0xff]
        %v292 = vld [vmem:[%s264 + $0x28] sm:$0xff]
        %v293 = vld [vmem:[%s264 + $0x30] sm:$0xff]
        %v294 = vld [vmem:[%s264 + $0x38] sm:$0xff]
        %v295 = vld [vmem:[%s264 + $0x40] sm:$0xff]
        %v296 = vld [vmem:[%s264 + $0x48] sm:$0xff]
        %v297 = vld [vmem:[%s264 + $0x50] sm:$0xff]
        %v298 = vld [vmem:[%s264 + $0x58] sm:$0xff]
        %v299 = vld [vmem:[%s264 + $0x60] sm:$0xff]
        %v300 = vld [vmem:[%s264 + $0x68] sm:$0xff]
        %v301 = vld [vmem:[%s264 + $0x70] sm:$0xff]
        %v302 = vld [vmem:[%s264 + $0x78] sm:$0xff]
        %v303 = vld [vmem:[%s264 + $0x80] sm:$0xff]
        %v304 = vld [vmem:[%s264 + $0x88] sm:$0xff]
        %v305 = vld [vmem:[%s264 + $0x90] sm:$0xff]
        %v306 = vld [vmem:[%s264 + $0x98] sm:$0xff]
        %v307 = vld [vmem:[%s264 + $0xa0] sm:$0xff]
        %v308 = vld [vmem:[%s264 + $0xa8] sm:$0xff]
        %v309 = vld [vmem:[%s264 + $0xb0] sm:$0xff]
        %v310 = vld [vmem:[%s264 + $0xb8] sm:$0xff]
        %v311 = vld [vmem:[%s264 + $0xc0] sm:$0xff]
        %v312 = vld [vmem:[%s264 + $0xc8] sm:$0xff]
        %v313 = vld [vmem:[%s264 + $0xd0] sm:$0xff]
        %v314 = vld [vmem:[%s264 + $0xd8] sm:$0xff]
        %v315 = vld [vmem:[%s264 + $0xe0] sm:$0xff]
        %v316 = vld [vmem:[%s264 + $0xe8] sm:$0xff]
        %v317 = vld [vmem:[%s264 + $0xf0] sm:$0xff]
        %v318 = vld [vmem:[%s264 + $0xf8] sm:$0xff]
        %v319 = vld [vmem:[%s264 + $0x100] sm:$0xff]
        %v320 = vld [vmem:[%s264 + $0x108] sm:$0xff]
        %v321 = vld [vmem:[%s264 + $0x110] sm:$0xff]
        %v322 = vld [vmem:[%s264 + $0x118] sm:$0xff]
        %v323 = vld [vmem:[%s264 + $0x120] sm:$0xff]
        %v324 = vld [vmem:[%s264 + $0x128] sm:$0xff]
        %v325 = vld [vmem:[%s264 + $0x130] sm:$0xff]
        %v326 = vld [vmem:[%s264 + $0x138] sm:$0xff]
        %v327 = vld [vmem:[%s264 + $0x140] sm:$0xff]
        %v328 = vld [vmem:[%s264 + $0x148] sm:$0xff]
        %v329 = vld [vmem:[%s264 + $0x150] sm:$0xff]
        %v330 = vld [vmem:[%s264 + $0x158] sm:$0xff]
        %v331 = vld [vmem:[%s264 + $0x160] sm:$0xff]
        %v332 = vld [vmem:[%s264 + $0x168] sm:$0xff]
        %v333 = vld [vmem:[%s264 + $0x170] sm:$0xff]
        %v334 = vld [vmem:[%s264 + $0x178] sm:$0xff]
        %v335 = vld [vmem:[%s264 + $0x180] sm:$0xff]
        %v336 = vld [vmem:[%s264 + $0x188] sm:$0xff]
        %v337 = vld [vmem:[%s264 + $0x190] sm:$0xff]
        %v338 = vld [vmem:[%s264 + $0x198] sm:$0xff]
        %v339 = vld [vmem:[%s264 + $0x1a0] sm:$0xff]
        %v340 = vld [vmem:[%s264 + $0x1a8] sm:$0xff]
        %v341 = vld [vmem:[%s264 + $0x1b0] sm:$0xff]
        %v342 = vld [vmem:[%s264 + $0x1b8] sm:$0xff]
        %v343 = vld [vmem:[%s264 + $0x1c0] sm:$0xff]
        %v344 = vld [vmem:[%s264 + $0x1c8] sm:$0xff]
        %v345 = vld [vmem:[%s264 + $0x1d0] sm:$0xff]
        %v346 = vld [vmem:[%s264 + $0x1d8] sm:$0xff]
        %v347 = vld [vmem:[%s264 + $0x1e0] sm:$0xff]
        %v348 = vld [vmem:[%s264 + $0x1e8] sm:$0xff]
        %v349 = vld [vmem:[%s264 + $0x1f0] sm:$0xff]
        %v350 = vld [vmem:[%s264 + $0x1f8] sm:$0xff]
        %v351 = vld [vmem:[%s274] sm:$0xf]
        %v352 = vld [vmem:[%s274 + $0x4] sm:$0xf]
        %v353 = vld [vmem:[%s274 + $0x8] sm:$0xf]
        %v354 = vld [vmem:[%s274 + $0xc] sm:$0xf]
        %v355 = vld [vmem:[%s274 + $0x10] sm:$0xf]
        %v356 = vld [vmem:[%s274 + $0x14] sm:$0xf]
        %v357 = vld [vmem:[%s274 + $0x18] sm:$0xf]
        %v358 = vld [vmem:[%s274 + $0x1c] sm:$0xf]
        %v359 = vld [vmem:[%s274 + $0x20] sm:$0xf]
        %v360 = vld [vmem:[%s274 + $0x24] sm:$0xf]
        %v361 = vld [vmem:[%s274 + $0x28] sm:$0xf]
        %v362 = vld [vmem:[%s274 + $0x2c] sm:$0xf]
        %v363 = vld [vmem:[%s274 + $0x30] sm:$0xf]
        %v364 = vld [vmem:[%s274 + $0x34] sm:$0xf]
        %v365 = vld [vmem:[%s274 + $0x38] sm:$0xf]
        %v366 = vld [vmem:[%s274 + $0x3c] sm:$0xf]
        %v367 = vld [vmem:[%s274 + $0x40] sm:$0xf]
        %v368 = vld [vmem:[%s274 + $0x44] sm:$0xf]
        %v369 = vld [vmem:[%s274 + $0x48] sm:$0x3]
        %v434 = vunpack.c.l.b16 %v287
        %v435 = vunpack.c.h.b16 %v287
        %v436 = vunpack.c.l.b16 %v288
        %v437 = vunpack.c.h.b16 %v288
        %v438 = vunpack.c.l.b16 %v289
        %v439 = vunpack.c.h.b16 %v289
        %v440 = vunpack.c.l.b16 %v290
        %v441 = vunpack.c.h.b16 %v290
        %v442 = vunpack.c.l.b16 %v291
        %v443 = vunpack.c.h.b16 %v291
        %v444 = vunpack.c.l.b16 %v292
        %v445 = vunpack.c.h.b16 %v292
        %v446 = vunpack.c.l.b16 %v293
        %v447 = vunpack.c.h.b16 %v293
        %v448 = vunpack.c.l.b16 %v294
        %v449 = vunpack.c.h.b16 %v294
        %v450 = vunpack.c.l.b16 %v295
        %v451 = vunpack.c.h.b16 %v295
        %v452 = vunpack.c.l.b16 %v296
        %v453 = vunpack.c.h.b16 %v296
        %v454 = vunpack.c.l.b16 %v297
        %v455 = vunpack.c.h.b16 %v297
        %v456 = vunpack.c.l.b16 %v298
        %v457 = vunpack.c.h.b16 %v298
        %v458 = vunpack.c.l.b16 %v299
        %v459 = vunpack.c.h.b16 %v299
        %v460 = vunpack.c.l.b16 %v300
        %v461 = vunpack.c.h.b16 %v300
        %v462 = vunpack.c.l.b16 %v301
        %v463 = vunpack.c.h.b16 %v301
        %v464 = vunpack.c.l.b16 %v302
        %v465 = vunpack.c.h.b16 %v302
        %v466 = vunpack.c.l.b16 %v303
        %v467 = vunpack.c.h.b16 %v303
        %v468 = vunpack.c.l.b16 %v304
        %v469 = vunpack.c.h.b16 %v304
        %v470 = vunpack.c.l.b16 %v305
        %v471 = vunpack.c.h.b16 %v305
        %v472 = vunpack.c.l.b16 %v306
        %v473 = vunpack.c.h.b16 %v306
        %v474 = vunpack.c.l.b16 %v307
        %v475 = vunpack.c.h.b16 %v307
        %v476 = vunpack.c.l.b16 %v308
        %v477 = vunpack.c.h.b16 %v308
        %v478 = vunpack.c.l.b16 %v309
        %v479 = vunpack.c.h.b16 %v309
        %v480 = vunpack.c.l.b16 %v310
        %v481 = vunpack.c.h.b16 %v310
        %v482 = vunpack.c.l.b16 %v311
        %v483 = vunpack.c.h.b16 %v311
        %v484 = vunpack.c.l.b16 %v312
        %v485 = vunpack.c.h.b16 %v312
        %v486 = vunpack.c.l.b16 %v313
        %v487 = vunpack.c.h.b16 %v313
        %v488 = vunpack.c.l.b16 %v314
        %v489 = vunpack.c.h.b16 %v314
        %v490 = vunpack.c.l.b16 %v315
        %v491 = vunpack.c.h.b16 %v315
        %v492 = vunpack.c.l.b16 %v316
        %v493 = vunpack.c.h.b16 %v316
        %v494 = vunpack.c.l.b16 %v317
        %v495 = vunpack.c.h.b16 %v317
        %v496 = vunpack.c.l.b16 %v318
        %v497 = vunpack.c.h.b16 %v318
        %v498 = vunpack.c.l.b16 %v319
        %v499 = vunpack.c.h.b16 %v319
        %v500 = vunpack.c.l.b16 %v320
        %v501 = vunpack.c.h.b16 %v320
        %v502 = vunpack.c.l.b16 %v321
        %v503 = vunpack.c.h.b16 %v321
        %v504 = vunpack.c.l.b16 %v322
        %v505 = vunpack.c.h.b16 %v322
        %v506 = vunpack.c.l.b16 %v323
        %v507 = vunpack.c.h.b16 %v323
        %v508 = vunpack.c.l.b16 %v324
        %v509 = vunpack.c.h.b16 %v324
        %v510 = vunpack.c.l.b16 %v325
        %v511 = vunpack.c.h.b16 %v325
        %v512 = vunpack.c.l.b16 %v326
        %v513 = vunpack.c.h.b16 %v326
        %v514 = vunpack.c.l.b16 %v327
        %v515 = vunpack.c.h.b16 %v327
        %v516 = vunpack.c.l.b16 %v328
        %v517 = vunpack.c.h.b16 %v328
        %v518 = vunpack.c.l.b16 %v329
        %v519 = vunpack.c.h.b16 %v329
        %v520 = vunpack.c.l.b16 %v330
        %v521 = vunpack.c.h.b16 %v330
        %v522 = vunpack.c.l.b16 %v331
        %v523 = vunpack.c.h.b16 %v331
        %v524 = vunpack.c.l.b16 %v332
        %v525 = vunpack.c.h.b16 %v332
        %v526 = vunpack.c.l.b16 %v333
        %v527 = vunpack.c.h.b16 %v333
        %v528 = vunpack.c.l.b16 %v334
        %v529 = vunpack.c.h.b16 %v334
        %v530 = vunpack.c.l.b16 %v335
        %v531 = vunpack.c.h.b16 %v335
        %v532 = vunpack.c.l.b16 %v336
        %v533 = vunpack.c.h.b16 %v336
        %v534 = vunpack.c.l.b16 %v337
        %v535 = vunpack.c.h.b16 %v337
        %v536 = vunpack.c.l.b16 %v338
        %v537 = vunpack.c.h.b16 %v338
        %v538 = vunpack.c.l.b16 %v339
        %v539 = vunpack.c.h.b16 %v339
        %v540 = vunpack.c.l.b16 %v340
        %v541 = vunpack.c.h.b16 %v340
        %v542 = vunpack.c.l.b16 %v341
        %v543 = vunpack.c.h.b16 %v341
        %v544 = vunpack.c.l.b16 %v342
        %v545 = vunpack.c.h.b16 %v342
        %v546 = vunpack.c.l.b16 %v343
        %v547 = vunpack.c.h.b16 %v343
        %v548 = vunpack.c.l.b16 %v344
        %v549 = vunpack.c.h.b16 %v344
        %v550 = vunpack.c.l.b16 %v345
        %v551 = vunpack.c.h.b16 %v345
        %v552 = vunpack.c.l.b16 %v346
        %v553 = vunpack.c.h.b16 %v346
        %v554 = vunpack.c.l.b16 %v347
        %v555 = vunpack.c.h.b16 %v347
        %v556 = vunpack.c.l.b16 %v348
        %v557 = vunpack.c.h.b16 %v348
        %v558 = vunpack.c.l.b16 %v349
        %v559 = vunpack.c.h.b16 %v349
        %v560 = vunpack.c.l.b16 %v350
        %v561 = vunpack.c.h.b16 %v350
        %v562 = vpack.c.b16 %v436, %v434
        %v563 = vpack.c.b16 %v437, %v435
        %v564 = vpack.c.b16 %v440, %v438
        %v565 = vpack.c.b16 %v441, %v439
        %v566 = vpack.c.b16 %v444, %v442
        %v567 = vpack.c.b16 %v445, %v443
        %v568 = vpack.c.b16 %v448, %v446
        %v569 = vpack.c.b16 %v449, %v447
        %v570 = vpack.c.b16 %v452, %v450
        %v571 = vpack.c.b16 %v453, %v451
        %v572 = vpack.c.b16 %v456, %v454
        %v573 = vpack.c.b16 %v457, %v455
        %v574 = vpack.c.b16 %v460, %v458
        %v575 = vpack.c.b16 %v461, %v459
        %v576 = vpack.c.b16 %v464, %v462
        %v577 = vpack.c.b16 %v465, %v463
        %v578 = vpack.c.b16 %v468, %v466
        %v579 = vpack.c.b16 %v469, %v467
        %v580 = vpack.c.b16 %v472, %v470
        %v581 = vpack.c.b16 %v473, %v471
        %v582 = vpack.c.b16 %v476, %v474
        %v583 = vpack.c.b16 %v477, %v475
        %v584 = vpack.c.b16 %v480, %v478
        %v585 = vpack.c.b16 %v481, %v479
        %v586 = vpack.c.b16 %v484, %v482
        %v587 = vpack.c.b16 %v485, %v483
        %v588 = vpack.c.b16 %v488, %v486
        %v589 = vpack.c.b16 %v489, %v487
        %v590 = vpack.c.b16 %v492, %v490
        %v591 = vpack.c.b16 %v493, %v491
        %v592 = vpack.c.b16 %v496, %v494
        %v593 = vpack.c.b16 %v497, %v495
        %v594 = vpack.c.b16 %v500, %v498
        %v595 = vpack.c.b16 %v501, %v499
        %v596 = vpack.c.b16 %v504, %v502
        %v597 = vpack.c.b16 %v505, %v503
        %v598 = vpack.c.b16 %v508, %v506
        %v599 = vpack.c.b16 %v509, %v507
        %v600 = vpack.c.b16 %v512, %v510
        %v601 = vpack.c.b16 %v513, %v511
        %v602 = vpack.c.b16 %v516, %v514
        %v603 = vpack.c.b16 %v517, %v515
        %v604 = vpack.c.b16 %v520, %v518
        %v605 = vpack.c.b16 %v521, %v519
        %v606 = vpack.c.b16 %v524, %v522
        %v607 = vpack.c.b16 %v525, %v523
        %v608 = vpack.c.b16 %v528, %v526
        %v609 = vpack.c.b16 %v529, %v527
        %v610 = vpack.c.b16 %v532, %v530
        %v611 = vpack.c.b16 %v533, %v531
        %v612 = vpack.c.b16 %v536, %v534
        %v613 = vpack.c.b16 %v537, %v535
        %v614 = vpack.c.b16 %v540, %v538
        %v615 = vpack.c.b16 %v541, %v539
        %v616 = vpack.c.b16 %v544, %v542
        %v617 = vpack.c.b16 %v545, %v543
        %v618 = vpack.c.b16 %v548, %v546
        %v619 = vpack.c.b16 %v549, %v547
        %v620 = vpack.c.b16 %v552, %v550
        %v621 = vpack.c.b16 %v553, %v551
        %v622 = vpack.c.b16 %v556, %v554
        %v623 = vpack.c.b16 %v557, %v555
        %v624 = vpack.c.b16 %v560, %v558
        %v625 = vpack.c.b16 %v561, %v559
        %v677 = vunpack.c.l.b16 %v351
        %v678 = vunpack.c.l.b16 %v352
        %v679 = vunpack.c.l.b16 %v353
        %v680 = vunpack.c.l.b16 %v354
        %v681 = vunpack.c.l.b16 %v355
        %v682 = vunpack.c.l.b16 %v356
        %v683 = vunpack.c.l.b16 %v357
        %v684 = vunpack.c.l.b16 %v358
        %v685 = vunpack.c.l.b16 %v359
        %v686 = vunpack.c.l.b16 %v360
        %v687 = vunpack.c.l.b16 %v361
        %v688 = vunpack.c.l.b16 %v362
        %v689 = vunpack.c.l.b16 %v363
        %v690 = vunpack.c.l.b16 %v364
        %v691 = vunpack.c.l.b16 %v365
        %v692 = vunpack.c.l.b16 %v366
        %v693 = vunpack.c.l.b16 %v367
        %v694 = vunpack.c.l.b16 %v368
        %v695 = vunpack.c.l.b16 %v369
        %v696 = vpack.c.b16 %v678, %v677
        %v697 = vpack.c.b16 %v680, %v679
        %v698 = vpack.c.b16 %v682, %v681
        %v699 = vpack.c.b16 %v684, %v683
        %v700 = vpack.c.b16 %v686, %v685
        %v701 = vpack.c.b16 %v688, %v687
        %v702 = vpack.c.b16 %v690, %v689
        %v703 = vpack.c.b16 %v692, %v691
        %v704 = vpack.c.b16 %v694, %v693
        %v705 = vpack.c.b16 %v695, %v695
        %vm715 = vcmask 154624
        %v717 = vsel %vm715, %v563, 0
        %v720 = vsel %vm715, %v565, 0
        %v723 = vsel %vm715, %v567, 0
        %v726 = vsel %vm715, %v569, 0
        %v729 = vsel %vm715, %v571, 0
        %v732 = vsel %vm715, %v573, 0
        %v735 = vsel %vm715, %v575, 0
        %v738 = vsel %vm715, %v577, 0
        %v741 = vsel %vm715, %v579, 0
        %v744 = vsel %vm715, %v581, 0
        %v747 = vsel %vm715, %v583, 0
        %v750 = vsel %vm715, %v585, 0
        %v753 = vsel %vm715, %v587, 0
        %v756 = vsel %vm715, %v589, 0
        %v759 = vsel %vm715, %v591, 0
        %v762 = vsel %vm715, %v593, 0
        %v765 = vsel %vm715, %v595, 0
        %v768 = vsel %vm715, %v597, 0
        %v771 = vsel %vm715, %v599, 0
        %v774 = vsel %vm715, %v601, 0
        %v777 = vsel %vm715, %v603, 0
        %v780 = vsel %vm715, %v605, 0
        %v783 = vsel %vm715, %v607, 0
        %v786 = vsel %vm715, %v609, 0
        %v789 = vsel %vm715, %v611, 0
        %v792 = vsel %vm715, %v613, 0
        %v795 = vsel %vm715, %v615, 0
        %v798 = vsel %vm715, %v617, 0
        %v801 = vsel %vm715, %v619, 0
        %v804 = vsel %vm715, %v621, 0
        %v807 = vsel %vm715, %v623, 0
        %v810 = vsel %vm715, %v625, 0
        %vm812 = vcmask 1040384
        %vm813 = vcmask 1041408
        %v814 = vsel %vm812, 4294967295, 65535
        %v815 = vsel %vm813, %v814, 0
        %v817 = vand.u32 %v705, %v815
        %819 = vmatpush.bf16.msra.mxu0 %v703
        %820 = vmatpush.bf16.msra.mxu0 %v702
        %821 = vmatpush.bf16.msra.mxu0 %v701
        %822 = vmatpush.bf16.msra.mxu0 %v700
        %823 = vmatpush.bf16.msra.mxu0 %v699
        %824 = vmatpush.bf16.msra.mxu0 %v698
        %825 = vmatpush.bf16.msra.mxu0 %v697
        %826 = vmatpush.bf16.msra.mxu0 %v696
        %827 = vmatmul.bf16.gmra.mxu0 %v562
        %v828 = vpop.f32.mrf.mxu0
        %v829 = vadd.f32 0.0, %v828
        %v830 = vpop.f32.mrf.mxu0
        %v831 = vadd.f32 0.0, %v830
        %832 = vmatmul.bf16.gmra.mxu0 %v564
        %v833 = vpop.f32.mrf.mxu0
        %v834 = vadd.f32 0.0, %v833
        %v835 = vpop.f32.mrf.mxu0
        %v836 = vadd.f32 0.0, %v835
        %837 = vmatmul.bf16.gmra.mxu0 %v566
        %v838 = vpop.f32.mrf.mxu0
        %v839 = vadd.f32 0.0, %v838
        %v840 = vpop.f32.mrf.mxu0
        %v841 = vadd.f32 0.0, %v840
        %842 = vmatmul.bf16.gmra.mxu0 %v568
        %v843 = vpop.f32.mrf.mxu0
        %v844 = vadd.f32 0.0, %v843
        %v845 = vpop.f32.mrf.mxu0
        %v846 = vadd.f32 0.0, %v845
        %847 = vmatmul.bf16.gmra.mxu0 %v570
        %v848 = vpop.f32.mrf.mxu0
        %v849 = vadd.f32 0.0, %v848
        %v850 = vpop.f32.mrf.mxu0
        %v851 = vadd.f32 0.0, %v850
        %852 = vmatmul.bf16.gmra.mxu0 %v572
        %v853 = vpop.f32.mrf.mxu0
        %v854 = vadd.f32 0.0, %v853
        %v855 = vpop.f32.mrf.mxu0
        %v856 = vadd.f32 0.0, %v855
        %857 = vmatmul.bf16.gmra.mxu0 %v574
        %v858 = vpop.f32.mrf.mxu0
        %v859 = vadd.f32 0.0, %v858
        %v860 = vpop.f32.mrf.mxu0
        %v861 = vadd.f32 0.0, %v860
        %862 = vmatmul.bf16.gmra.mxu0 %v576
        %v863 = vpop.f32.mrf.mxu0
        %v864 = vadd.f32 0.0, %v863
        %v865 = vpop.f32.mrf.mxu0
        %v866 = vadd.f32 0.0, %v865
        %867 = vmatmul.bf16.gmra.mxu0 %v578
        %v868 = vpop.f32.mrf.mxu0
        %v869 = vadd.f32 0.0, %v868
        %v870 = vpop.f32.mrf.mxu0
        %v871 = vadd.f32 0.0, %v870
        %872 = vmatmul.bf16.gmra.mxu0 %v580
        %v873 = vpop.f32.mrf.mxu0
        %v874 = vadd.f32 0.0, %v873
        %v875 = vpop.f32.mrf.mxu0
        %v876 = vadd.f32 0.0, %v875
        %877 = vmatmul.bf16.gmra.mxu0 %v582
        %v878 = vpop.f32.mrf.mxu0
        %v879 = vadd.f32 0.0, %v878
        %v880 = vpop.f32.mrf.mxu0
        %v881 = vadd.f32 0.0, %v880
        %882 = vmatmul.bf16.gmra.mxu0 %v584
        %v883 = vpop.f32.mrf.mxu0
        %v884 = vadd.f32 0.0, %v883
        %v885 = vpop.f32.mrf.mxu0
        %v886 = vadd.f32 0.0, %v885
        %887 = vmatmul.bf16.gmra.mxu0 %v586
        %v888 = vpop.f32.mrf.mxu0
        %v889 = vadd.f32 0.0, %v888
        %v890 = vpop.f32.mrf.mxu0
        %v891 = vadd.f32 0.0, %v890
        %892 = vmatmul.bf16.gmra.mxu0 %v588
        %v893 = vpop.f32.mrf.mxu0
        %v894 = vadd.f32 0.0, %v893
        %v895 = vpop.f32.mrf.mxu0
        %v896 = vadd.f32 0.0, %v895
        %897 = vmatmul.bf16.gmra.mxu0 %v590
        %v898 = vpop.f32.mrf.mxu0
        %v899 = vadd.f32 0.0, %v898
        %v900 = vpop.f32.mrf.mxu0
        %v901 = vadd.f32 0.0, %v900
        %902 = vmatmul.bf16.gmra.mxu0 %v592
        %v903 = vpop.f32.mrf.mxu0
        %v904 = vadd.f32 0.0, %v903
        %v905 = vpop.f32.mrf.mxu0
        %v906 = vadd.f32 0.0, %v905
        %907 = vmatmul.bf16.gmra.mxu0 %v594
        %v908 = vpop.f32.mrf.mxu0
        %v909 = vadd.f32 0.0, %v908
        %v910 = vpop.f32.mrf.mxu0
        %v911 = vadd.f32 0.0, %v910
        %912 = vmatmul.bf16.gmra.mxu0 %v596
        %v913 = vpop.f32.mrf.mxu0
        %v914 = vadd.f32 0.0, %v913
        %v915 = vpop.f32.mrf.mxu0
        %v916 = vadd.f32 0.0, %v915
        %917 = vmatmul.bf16.gmra.mxu0 %v598
        %v918 = vpop.f32.mrf.mxu0
        %v919 = vadd.f32 0.0, %v918
        %v920 = vpop.f32.mrf.mxu0
        %v921 = vadd.f32 0.0, %v920
        %922 = vmatmul.bf16.gmra.mxu0 %v600
        %v923 = vpop.f32.mrf.mxu0
        %v924 = vadd.f32 0.0, %v923
        %v925 = vpop.f32.mrf.mxu0
        %v926 = vadd.f32 0.0, %v925
        %927 = vmatmul.bf16.gmra.mxu0 %v602
        %v928 = vpop.f32.mrf.mxu0
        %v929 = vadd.f32 0.0, %v928
        %v930 = vpop.f32.mrf.mxu0
        %v931 = vadd.f32 0.0, %v930
        %932 = vmatmul.bf16.gmra.mxu0 %v604
        %v933 = vpop.f32.mrf.mxu0
        %v934 = vadd.f32 0.0, %v933
        %v935 = vpop.f32.mrf.mxu0
        %v936 = vadd.f32 0.0, %v935
        %937 = vmatmul.bf16.gmra.mxu0 %v606
        %v938 = vpop.f32.mrf.mxu0
        %v939 = vadd.f32 0.0, %v938
        %v940 = vpop.f32.mrf.mxu0
        %v941 = vadd.f32 0.0, %v940
        %942 = vmatmul.bf16.gmra.mxu0 %v608
        %v943 = vpop.f32.mrf.mxu0
        %v944 = vadd.f32 0.0, %v943
        %v945 = vpop.f32.mrf.mxu0
        %v946 = vadd.f32 0.0, %v945
        %947 = vmatmul.bf16.gmra.mxu0 %v610
        %v948 = vpop.f32.mrf.mxu0
        %v949 = vadd.f32 0.0, %v948
        %v950 = vpop.f32.mrf.mxu0
        %v951 = vadd.f32 0.0, %v950
        %952 = vmatmul.bf16.gmra.mxu0 %v612
        %v953 = vpop.f32.mrf.mxu0
        %v954 = vadd.f32 0.0, %v953
        %v955 = vpop.f32.mrf.mxu0
        %v956 = vadd.f32 0.0, %v955
        %957 = vmatmul.bf16.gmra.mxu0 %v614
        %v958 = vpop.f32.mrf.mxu0
        %v959 = vadd.f32 0.0, %v958
        %v960 = vpop.f32.mrf.mxu0
        %v961 = vadd.f32 0.0, %v960
        %962 = vmatmul.bf16.gmra.mxu0 %v616
        %v963 = vpop.f32.mrf.mxu0
        %v964 = vadd.f32 0.0, %v963
        %v965 = vpop.f32.mrf.mxu0
        %v966 = vadd.f32 0.0, %v965
        %967 = vmatmul.bf16.gmra.mxu0 %v618
        %v968 = vpop.f32.mrf.mxu0
        %v969 = vadd.f32 0.0, %v968
        %v970 = vpop.f32.mrf.mxu0
        %v971 = vadd.f32 0.0, %v970
        %972 = vmatmul.bf16.gmra.mxu0 %v620
        %v973 = vpop.f32.mrf.mxu0
        %v974 = vadd.f32 0.0, %v973
        %v975 = vpop.f32.mrf.mxu0
        %v976 = vadd.f32 0.0, %v975
        %977 = vmatmul.bf16.gmra.mxu0 %v622
        %v978 = vpop.f32.mrf.mxu0
        %v979 = vadd.f32 0.0, %v978
        %v980 = vpop.f32.mrf.mxu0
        %v981 = vadd.f32 0.0, %v980
        %982 = vmatmul.bf16.gmra.mxu0 %v624
        %v983 = vpop.f32.mrf.mxu0
        %v984 = vadd.f32 0.0, %v983
        %v985 = vpop.f32.mrf.mxu0
        %v986 = vadd.f32 0.0, %v985
        %987 = vdwg.mxu0
        %988 = vmatpush.bf16.msra.mxu0 0
        %989 = vmatpush.bf16.msra.mxu0 0
        %990 = vmatpush.bf16.msra.mxu0 0
        %991 = vmatpush.bf16.msra.mxu0 0
        %992 = vmatpush.bf16.msra.mxu0 0
        %993 = vmatpush.bf16.msra.mxu0 0
        %994 = vmatpush.bf16.msra.mxu0 %v817
        %995 = vmatpush.bf16.msra.mxu0 %v704
        %996 = vmatmul.bf16.gmra.mxu0 %v717
        %v997 = vpop.f32.mrf.mxu0
        %v998 = vadd.f32 %v829, %v997
        %v999 = vpop.f32.mrf.mxu0
        %v1000 = vadd.f32 %v831, %v999
        %1001 = vmatmul.bf16.gmra.mxu0 %v720
        %v1002 = vpop.f32.mrf.mxu0
        %v1003 = vadd.f32 %v834, %v1002
        %v1004 = vpop.f32.mrf.mxu0
        %v1005 = vadd.f32 %v836, %v1004
        %1006 = vmatmul.bf16.gmra.mxu0 %v723
        %v1007 = vpop.f32.mrf.mxu0
        %v1008 = vadd.f32 %v839, %v1007
        %v1009 = vpop.f32.mrf.mxu0
        %v1010 = vadd.f32 %v841, %v1009
        %1011 = vmatmul.bf16.gmra.mxu0 %v726
        %v1012 = vpop.f32.mrf.mxu0
        %v1013 = vadd.f32 %v844, %v1012
        %v1014 = vpop.f32.mrf.mxu0
        %v1015 = vadd.f32 %v846, %v1014
        %1016 = vmatmul.bf16.gmra.mxu0 %v729
        %v1017 = vpop.f32.mrf.mxu0
        %v1018 = vadd.f32 %v849, %v1017
        %v1019 = vpop.f32.mrf.mxu0
        %v1020 = vadd.f32 %v851, %v1019
        %1021 = vmatmul.bf16.gmra.mxu0 %v732
        %v1022 = vpop.f32.mrf.mxu0
        %v1023 = vadd.f32 %v854, %v1022
        %v1024 = vpop.f32.mrf.mxu0
        %v1025 = vadd.f32 %v856, %v1024
        %1026 = vmatmul.bf16.gmra.mxu0 %v735
        %v1027 = vpop.f32.mrf.mxu0
        %v1028 = vadd.f32 %v859, %v1027
        %v1029 = vpop.f32.mrf.mxu0
        %v1030 = vadd.f32 %v861, %v1029
        %1031 = vmatmul.bf16.gmra.mxu0 %v738
        %v1032 = vpop.f32.mrf.mxu0
        %v1033 = vadd.f32 %v864, %v1032
        %v1034 = vpop.f32.mrf.mxu0
        %v1035 = vadd.f32 %v866, %v1034
        %1036 = vmatmul.bf16.gmra.mxu0 %v741
        %v1037 = vpop.f32.mrf.mxu0
        %v1038 = vadd.f32 %v869, %v1037
        %v1039 = vpop.f32.mrf.mxu0
        %v1040 = vadd.f32 %v871, %v1039
        %1041 = vmatmul.bf16.gmra.mxu0 %v744
        %v1042 = vpop.f32.mrf.mxu0
        %v1043 = vadd.f32 %v874, %v1042
        %v1044 = vpop.f32.mrf.mxu0
        %v1045 = vadd.f32 %v876, %v1044
        %1046 = vmatmul.bf16.gmra.mxu0 %v747
        %v1047 = vpop.f32.mrf.mxu0
        %v1048 = vadd.f32 %v879, %v1047
        %v1049 = vpop.f32.mrf.mxu0
        %v1050 = vadd.f32 %v881, %v1049
        %1051 = vmatmul.bf16.gmra.mxu0 %v750
        %v1052 = vpop.f32.mrf.mxu0
        %v1053 = vadd.f32 %v884, %v1052
        %v1054 = vpop.f32.mrf.mxu0
        %v1055 = vadd.f32 %v886, %v1054
        %1056 = vmatmul.bf16.gmra.mxu0 %v753
        %v1057 = vpop.f32.mrf.mxu0
        %v1058 = vadd.f32 %v889, %v1057
        %v1059 = vpop.f32.mrf.mxu0
        %v1060 = vadd.f32 %v891, %v1059
        %1061 = vmatmul.bf16.gmra.mxu0 %v756
        %v1062 = vpop.f32.mrf.mxu0
        %v1063 = vadd.f32 %v894, %v1062
        %v1064 = vpop.f32.mrf.mxu0
        %v1065 = vadd.f32 %v896, %v1064
        %1066 = vmatmul.bf16.gmra.mxu0 %v759
        %v1067 = vpop.f32.mrf.mxu0
        %v1068 = vadd.f32 %v899, %v1067
        %v1069 = vpop.f32.mrf.mxu0
        %v1070 = vadd.f32 %v901, %v1069
        %1071 = vmatmul.bf16.gmra.mxu0 %v762
        %v1072 = vpop.f32.mrf.mxu0
        %v1073 = vadd.f32 %v904, %v1072
        %v1074 = vpop.f32.mrf.mxu0
        %v1075 = vadd.f32 %v906, %v1074
        %1076 = vmatmul.bf16.gmra.mxu0 %v765
        %v1077 = vpop.f32.mrf.mxu0
        %v1078 = vadd.f32 %v909, %v1077
        %v1079 = vpop.f32.mrf.mxu0
        %v1080 = vadd.f32 %v911, %v1079
        %1081 = vmatmul.bf16.gmra.mxu0 %v768
        %v1082 = vpop.f32.mrf.mxu0
        %v1083 = vadd.f32 %v914, %v1082
        %v1084 = vpop.f32.mrf.mxu0
        %v1085 = vadd.f32 %v916, %v1084
        %1086 = vmatmul.bf16.gmra.mxu0 %v771
        %v1087 = vpop.f32.mrf.mxu0
        %v1088 = vadd.f32 %v919, %v1087
        %v1089 = vpop.f32.mrf.mxu0
        %v1090 = vadd.f32 %v921, %v1089
        %1091 = vmatmul.bf16.gmra.mxu0 %v774
        %v1092 = vpop.f32.mrf.mxu0
        %v1093 = vadd.f32 %v924, %v1092
        %v1094 = vpop.f32.mrf.mxu0
        %v1095 = vadd.f32 %v926, %v1094
        %1096 = vmatmul.bf16.gmra.mxu0 %v777
        %v1097 = vpop.f32.mrf.mxu0
        %v1098 = vadd.f32 %v929, %v1097
        %v1099 = vpop.f32.mrf.mxu0
        %v1100 = vadd.f32 %v931, %v1099
        %1101 = vmatmul.bf16.gmra.mxu0 %v780
        %v1102 = vpop.f32.mrf.mxu0
        %v1103 = vadd.f32 %v934, %v1102
        %v1104 = vpop.f32.mrf.mxu0
        %v1105 = vadd.f32 %v936, %v1104
        %1106 = vmatmul.bf16.gmra.mxu0 %v783
        %v1107 = vpop.f32.mrf.mxu0
        %v1108 = vadd.f32 %v939, %v1107
        %v1109 = vpop.f32.mrf.mxu0
        %v1110 = vadd.f32 %v941, %v1109
        %1111 = vmatmul.bf16.gmra.mxu0 %v786
        %v1112 = vpop.f32.mrf.mxu0
        %v1113 = vadd.f32 %v944, %v1112
        %v1114 = vpop.f32.mrf.mxu0
        %v1115 = vadd.f32 %v946, %v1114
        %1116 = vmatmul.bf16.gmra.mxu0 %v789
        %v1117 = vpop.f32.mrf.mxu0
        %v1118 = vadd.f32 %v949, %v1117
        %v1119 = vpop.f32.mrf.mxu0
        %v1120 = vadd.f32 %v951, %v1119
        %1121 = vmatmul.bf16.gmra.mxu0 %v792
        %v1122 = vpop.f32.mrf.mxu0
        %v1123 = vadd.f32 %v954, %v1122
        %v1124 = vpop.f32.mrf.mxu0
        %v1125 = vadd.f32 %v956, %v1124
        %1126 = vmatmul.bf16.gmra.mxu0 %v795
        %v1127 = vpop.f32.mrf.mxu0
        %v1128 = vadd.f32 %v959, %v1127
        %v1129 = vpop.f32.mrf.mxu0
        %v1130 = vadd.f32 %v961, %v1129
        %1131 = vmatmul.bf16.gmra.mxu0 %v798
        %v1132 = vpop.f32.mrf.mxu0
        %v1133 = vadd.f32 %v964, %v1132
        %v1134 = vpop.f32.mrf.mxu0
        %v1135 = vadd.f32 %v966, %v1134
        %1136 = vmatmul.bf16.gmra.mxu0 %v801
        %v1137 = vpop.f32.mrf.mxu0
        %v1138 = vadd.f32 %v969, %v1137
        %v1139 = vpop.f32.mrf.mxu0
        %v1140 = vadd.f32 %v971, %v1139
        %1141 = vmatmul.bf16.gmra.mxu0 %v804
        %v1142 = vpop.f32.mrf.mxu0
        %v1143 = vadd.f32 %v974, %v1142
        %v1144 = vpop.f32.mrf.mxu0
        %v1145 = vadd.f32 %v976, %v1144
        %1146 = vmatmul.bf16.gmra.mxu0 %v807
        %v1147 = vpop.f32.mrf.mxu0
        %v1148 = vadd.f32 %v979, %v1147
        %v1149 = vpop.f32.mrf.mxu0
        %v1150 = vadd.f32 %v981, %v1149
        %1151 = vmatmul.bf16.gmra.mxu0 %v810
        %v1152 = vpop.f32.mrf.mxu0
        %v1153 = vadd.f32 %v984, %v1152
        %v1154 = vpop.f32.mrf.mxu0
        %v1155 = vadd.f32 %v986, %v1154
        %1156 = vdwg.mxu0
        %v1157 = vld [vmem:[%s277] sm:$0x1]
        %v1159 = vperm.slane %v1157, 0
        %v1161 = vmul.f32 %v998, %v1159
        %v1162 = vmul.f32 %v1000, %v1159
        %v1163 = vmul.f32 %v1003, %v1159
        %v1164 = vmul.f32 %v1005, %v1159
        %v1165 = vmul.f32 %v1008, %v1159
        %v1166 = vmul.f32 %v1010, %v1159
        %v1167 = vmul.f32 %v1013, %v1159
        %v1168 = vmul.f32 %v1015, %v1159
        %v1169 = vmul.f32 %v1018, %v1159
        %v1170 = vmul.f32 %v1020, %v1159
        %v1171 = vmul.f32 %v1023, %v1159
        %v1172 = vmul.f32 %v1025, %v1159
        %v1173 = vmul.f32 %v1028, %v1159
        %v1174 = vmul.f32 %v1030, %v1159
        %v1175 = vmul.f32 %v1033, %v1159
        %v1176 = vmul.f32 %v1035, %v1159
        %v1177 = vmul.f32 %v1038, %v1159
        %v1178 = vmul.f32 %v1040, %v1159
        %v1179 = vmul.f32 %v1043, %v1159
        %v1180 = vmul.f32 %v1045, %v1159
        %v1181 = vmul.f32 %v1048, %v1159
        %v1182 = vmul.f32 %v1050, %v1159
        %v1183 = vmul.f32 %v1053, %v1159
        %v1184 = vmul.f32 %v1055, %v1159
        %v1185 = vmul.f32 %v1058, %v1159
        %v1186 = vmul.f32 %v1060, %v1159
        %v1187 = vmul.f32 %v1063, %v1159
        %v1188 = vmul.f32 %v1065, %v1159
        %v1189 = vmul.f32 %v1068, %v1159
        %v1190 = vmul.f32 %v1070, %v1159
        %v1191 = vmul.f32 %v1073, %v1159
        %v1192 = vmul.f32 %v1075, %v1159
        %v1193 = vmul.f32 %v1078, %v1159
        %v1194 = vmul.f32 %v1080, %v1159
        %v1195 = vmul.f32 %v1083, %v1159
        %v1196 = vmul.f32 %v1085, %v1159
        %v1197 = vmul.f32 %v1088, %v1159
        %v1198 = vmul.f32 %v1090, %v1159
        %v1199 = vmul.f32 %v1093, %v1159
        %v1200 = vmul.f32 %v1095, %v1159
        %v1201 = vmul.f32 %v1098, %v1159
        %v1202 = vmul.f32 %v1100, %v1159
        %v1203 = vmul.f32 %v1103, %v1159
        %v1204 = vmul.f32 %v1105, %v1159
        %v1205 = vmul.f32 %v1108, %v1159
        %v1206 = vmul.f32 %v1110, %v1159
        %v1207 = vmul.f32 %v1113, %v1159
        %v1208 = vmul.f32 %v1115, %v1159
        %v1209 = vmul.f32 %v1118, %v1159
        %v1210 = vmul.f32 %v1120, %v1159
        %v1211 = vmul.f32 %v1123, %v1159
        %v1212 = vmul.f32 %v1125, %v1159
        %v1213 = vmul.f32 %v1128, %v1159
        %v1214 = vmul.f32 %v1130, %v1159
        %v1215 = vmul.f32 %v1133, %v1159
        %v1216 = vmul.f32 %v1135, %v1159
        %v1217 = vmul.f32 %v1138, %v1159
        %v1218 = vmul.f32 %v1140, %v1159
        %v1219 = vmul.f32 %v1143, %v1159
        %v1220 = vmul.f32 %v1145, %v1159
        %v1221 = vmul.f32 %v1148, %v1159
        %v1222 = vmul.f32 %v1150, %v1159
        %v1223 = vmul.f32 %v1153, %v1159
        %v1224 = vmul.f32 %v1155, %v1159
        %v1225 = vld [vmem:[%s280] sm:$0x1]
        %v1227 = vperm.slane %v1225, 0
        %v1229 = vadd.f32 %v1161, %v1227
        %v1230 = vadd.f32 %v1162, %v1227
        %v1231 = vadd.f32 %v1163, %v1227
        %v1232 = vadd.f32 %v1164, %v1227
        %v1233 = vadd.f32 %v1165, %v1227
        %v1234 = vadd.f32 %v1166, %v1227
        %v1235 = vadd.f32 %v1167, %v1227
        %v1236 = vadd.f32 %v1168, %v1227
        %v1237 = vadd.f32 %v1169, %v1227
        %v1238 = vadd.f32 %v1170, %v1227
        %v1239 = vadd.f32 %v1171, %v1227
        %v1240 = vadd.f32 %v1172, %v1227
        %v1241 = vadd.f32 %v1173, %v1227
        %v1242 = vadd.f32 %v1174, %v1227
        %v1243 = vadd.f32 %v1175, %v1227
        %v1244 = vadd.f32 %v1176, %v1227
        %v1245 = vadd.f32 %v1177, %v1227
        %v1246 = vadd.f32 %v1178, %v1227
        %v1247 = vadd.f32 %v1179, %v1227
        %v1248 = vadd.f32 %v1180, %v1227
        %v1249 = vadd.f32 %v1181, %v1227
        %v1250 = vadd.f32 %v1182, %v1227
        %v1251 = vadd.f32 %v1183, %v1227
        %v1252 = vadd.f32 %v1184, %v1227
        %v1253 = vadd.f32 %v1185, %v1227
        %v1254 = vadd.f32 %v1186, %v1227
        %v1255 = vadd.f32 %v1187, %v1227
        %v1256 = vadd.f32 %v1188, %v1227
        %v1257 = vadd.f32 %v1189, %v1227
        %v1258 = vadd.f32 %v1190, %v1227
        %v1259 = vadd.f32 %v1191, %v1227
        %v1260 = vadd.f32 %v1192, %v1227
        %v1261 = vadd.f32 %v1193, %v1227
        %v1262 = vadd.f32 %v1194, %v1227
        %v1263 = vadd.f32 %v1195, %v1227
        %v1264 = vadd.f32 %v1196, %v1227
        %v1265 = vadd.f32 %v1197, %v1227
        %v1266 = vadd.f32 %v1198, %v1227
        %v1267 = vadd.f32 %v1199, %v1227
        %v1268 = vadd.f32 %v1200, %v1227
        %v1269 = vadd.f32 %v1201, %v1227
        %v1270 = vadd.f32 %v1202, %v1227
        %v1271 = vadd.f32 %v1203, %v1227
        %v1272 = vadd.f32 %v1204, %v1227
        %v1273 = vadd.f32 %v1205, %v1227
        %v1274 = vadd.f32 %v1206, %v1227
        %v1275 = vadd.f32 %v1207, %v1227
        %v1276 = vadd.f32 %v1208, %v1227
        %v1277 = vadd.f32 %v1209, %v1227
        %v1278 = vadd.f32 %v1210, %v1227
        %v1279 = vadd.f32 %v1211, %v1227
        %v1280 = vadd.f32 %v1212, %v1227
        %v1281 = vadd.f32 %v1213, %v1227
        %v1282 = vadd.f32 %v1214, %v1227
        %v1283 = vadd.f32 %v1215, %v1227
        %v1284 = vadd.f32 %v1216, %v1227
        %v1285 = vadd.f32 %v1217, %v1227
        %v1286 = vadd.f32 %v1218, %v1227
        %v1287 = vadd.f32 %v1219, %v1227
        %v1288 = vadd.f32 %v1220, %v1227
        %v1289 = vadd.f32 %v1221, %v1227
        %v1290 = vadd.f32 %v1222, %v1227
        %v1291 = vadd.f32 %v1223, %v1227
        %v1292 = vadd.f32 %v1224, %v1227
        %v1293 = vmax.f32 %v1229, 0.0
        %v1294 = vmax.f32 %v1230, 0.0
        %v1295 = vmax.f32 %v1231, 0.0
        %v1296 = vmax.f32 %v1232, 0.0
        %v1297 = vmax.f32 %v1233, 0.0
        %v1298 = vmax.f32 %v1234, 0.0
        %v1299 = vmax.f32 %v1235, 0.0
        %v1300 = vmax.f32 %v1236, 0.0
        %v1301 = vmax.f32 %v1237, 0.0
        %v1302 = vmax.f32 %v1238, 0.0
        %v1303 = vmax.f32 %v1239, 0.0
        %v1304 = vmax.f32 %v1240, 0.0
        %v1305 = vmax.f32 %v1241, 0.0
        %v1306 = vmax.f32 %v1242, 0.0
        %v1307 = vmax.f32 %v1243, 0.0
        %v1308 = vmax.f32 %v1244, 0.0
        %v1309 = vmax.f32 %v1245, 0.0
        %v1310 = vmax.f32 %v1246, 0.0
        %v1311 = vmax.f32 %v1247, 0.0
        %v1312 = vmax.f32 %v1248, 0.0
        %v1313 = vmax.f32 %v1249, 0.0
        %v1314 = vmax.f32 %v1250, 0.0
        %v1315 = vmax.f32 %v1251, 0.0
        %v1316 = vmax.f32 %v1252, 0.0
        %v1317 = vmax.f32 %v1253, 0.0
        %v1318 = vmax.f32 %v1254, 0.0
        %v1319 = vmax.f32 %v1255, 0.0
        %v1320 = vmax.f32 %v1256, 0.0
        %v1321 = vmax.f32 %v1257, 0.0
        %v1322 = vmax.f32 %v1258, 0.0
        %v1323 = vmax.f32 %v1259, 0.0
        %v1324 = vmax.f32 %v1260, 0.0
        %v1325 = vmax.f32 %v1261, 0.0
        %v1326 = vmax.f32 %v1262, 0.0
        %v1327 = vmax.f32 %v1263, 0.0
        %v1328 = vmax.f32 %v1264, 0.0
        %v1329 = vmax.f32 %v1265, 0.0
        %v1330 = vmax.f32 %v1266, 0.0
        %v1331 = vmax.f32 %v1267, 0.0
        %v1332 = vmax.f32 %v1268, 0.0
        %v1333 = vmax.f32 %v1269, 0.0
        %v1334 = vmax.f32 %v1270, 0.0
        %v1335 = vmax.f32 %v1271, 0.0
        %v1336 = vmax.f32 %v1272, 0.0
        %v1337 = vmax.f32 %v1273, 0.0
        %v1338 = vmax.f32 %v1274, 0.0
        %v1339 = vmax.f32 %v1275, 0.0
        %v1340 = vmax.f32 %v1276, 0.0
        %v1341 = vmax.f32 %v1277, 0.0
        %v1342 = vmax.f32 %v1278, 0.0
        %v1343 = vmax.f32 %v1279, 0.0
        %v1344 = vmax.f32 %v1280, 0.0
        %v1345 = vmax.f32 %v1281, 0.0
        %v1346 = vmax.f32 %v1282, 0.0
        %v1347 = vmax.f32 %v1283, 0.0
        %v1348 = vmax.f32 %v1284, 0.0
        %v1349 = vmax.f32 %v1285, 0.0
        %v1350 = vmax.f32 %v1286, 0.0
        %v1351 = vmax.f32 %v1287, 0.0
        %v1352 = vmax.f32 %v1288, 0.0
        %v1353 = vmax.f32 %v1289, 0.0
        %v1354 = vmax.f32 %v1290, 0.0
        %v1355 = vmax.f32 %v1291, 0.0
        %v1356 = vmax.f32 %v1292, 0.0
        %v1357 = vpack.c.bf16 %v1293, %v1293
        %v1358 = vpack.c.bf16 %v1294, %v1294
        %v1359 = vpack.c.bf16 %v1295, %v1295
        %v1360 = vpack.c.bf16 %v1296, %v1296
        %v1361 = vpack.c.bf16 %v1297, %v1297
        %v1362 = vpack.c.bf16 %v1298, %v1298
        %v1363 = vpack.c.bf16 %v1299, %v1299
        %v1364 = vpack.c.bf16 %v1300, %v1300
        %v1365 = vpack.c.bf16 %v1301, %v1301
        %v1366 = vpack.c.bf16 %v1302, %v1302
        %v1367 = vpack.c.bf16 %v1303, %v1303
        %v1368 = vpack.c.bf16 %v1304, %v1304
        %v1369 = vpack.c.bf16 %v1305, %v1305
        %v1370 = vpack.c.bf16 %v1306, %v1306
        %v1371 = vpack.c.bf16 %v1307, %v1307
        %v1372 = vpack.c.bf16 %v1308, %v1308
        %v1373 = vpack.c.bf16 %v1309, %v1309
        %v1374 = vpack.c.bf16 %v1310, %v1310
        %v1375 = vpack.c.bf16 %v1311, %v1311
        %v1376 = vpack.c.bf16 %v1312, %v1312
        %v1377 = vpack.c.bf16 %v1313, %v1313
        %v1378 = vpack.c.bf16 %v1314, %v1314
        %v1379 = vpack.c.bf16 %v1315, %v1315
        %v1380 = vpack.c.bf16 %v1316, %v1316
        %v1381 = vpack.c.bf16 %v1317, %v1317
        %v1382 = vpack.c.bf16 %v1318, %v1318
        %v1383 = vpack.c.bf16 %v1319, %v1319
        %v1384 = vpack.c.bf16 %v1320, %v1320
        %v1385 = vpack.c.bf16 %v1321, %v1321
        %v1386 = vpack.c.bf16 %v1322, %v1322
        %v1387 = vpack.c.bf16 %v1323, %v1323
        %v1388 = vpack.c.bf16 %v1324, %v1324
        %v1389 = vpack.c.bf16 %v1325, %v1325
        %v1390 = vpack.c.bf16 %v1326, %v1326
        %v1391 = vpack.c.bf16 %v1327, %v1327
        %v1392 = vpack.c.bf16 %v1328, %v1328
        %v1393 = vpack.c.bf16 %v1329, %v1329
        %v1394 = vpack.c.bf16 %v1330, %v1330
        %v1395 = vpack.c.bf16 %v1331, %v1331
        %v1396 = vpack.c.bf16 %v1332, %v1332
        %v1397 = vpack.c.bf16 %v1333, %v1333
        %v1398 = vpack.c.bf16 %v1334, %v1334
        %v1399 = vpack.c.bf16 %v1335, %v1335
        %v1400 = vpack.c.bf16 %v1336, %v1336
        %v1401 = vpack.c.bf16 %v1337, %v1337
        %v1402 = vpack.c.bf16 %v1338, %v1338
        %v1403 = vpack.c.bf16 %v1339, %v1339
        %v1404 = vpack.c.bf16 %v1340, %v1340
        %v1405 = vpack.c.bf16 %v1341, %v1341
        %v1406 = vpack.c.bf16 %v1342, %v1342
        %v1407 = vpack.c.bf16 %v1343, %v1343
        %v1408 = vpack.c.bf16 %v1344, %v1344
        %v1409 = vpack.c.bf16 %v1345, %v1345
        %v1410 = vpack.c.bf16 %v1346, %v1346
        %v1411 = vpack.c.bf16 %v1347, %v1347
        %v1412 = vpack.c.bf16 %v1348, %v1348
        %v1413 = vpack.c.bf16 %v1349, %v1349
        %v1414 = vpack.c.bf16 %v1350, %v1350
        %v1415 = vpack.c.bf16 %v1351, %v1351
        %v1416 = vpack.c.bf16 %v1352, %v1352
        %v1417 = vpack.c.bf16 %v1353, %v1353
        %v1418 = vpack.c.bf16 %v1354, %v1354
        %v1419 = vpack.c.bf16 %v1355, %v1355
        %v1420 = vpack.c.bf16 %v1356, %v1356
        %vm1421 = vcmask 519168
        %1422 = vst.msk [vmem:[%s253] sm:$0xf] %vm1421, %v1357
        %1423 = vst.msk [vmem:[%s253 + $0x4] sm:$0xf] %vm1421, %v1358
        %1424 = vst.msk [vmem:[%s253 + $0x8] sm:$0xf] %vm1421, %v1359
        %1425 = vst.msk [vmem:[%s253 + $0xc] sm:$0xf] %vm1421, %v1360
        %1426 = vst.msk [vmem:[%s253 + $0x10] sm:$0xf] %vm1421, %v1361
        %1427 = vst.msk [vmem:[%s253 + $0x14] sm:$0xf] %vm1421, %v1362
        %1428 = vst.msk [vmem:[%s253 + $0x18] sm:$0xf] %vm1421, %v1363
        %1429 = vst.msk [vmem:[%s253 + $0x1c] sm:$0xf] %vm1421, %v1364
        %1430 = vst.msk [vmem:[%s253 + $0x20] sm:$0xf] %vm1421, %v1365
        %1431 = vst.msk [vmem:[%s253 + $0x24] sm:$0xf] %vm1421, %v1366
        %1432 = vst.msk [vmem:[%s253 + $0x28] sm:$0xf] %vm1421, %v1367
        %1433 = vst.msk [vmem:[%s253 + $0x2c] sm:$0xf] %vm1421, %v1368
        %1434 = vst.msk [vmem:[%s253 + $0x30] sm:$0xf] %vm1421, %v1369
        %1435 = vst.msk [vmem:[%s253 + $0x34] sm:$0xf] %vm1421, %v1370
        %1436 = vst.msk [vmem:[%s253 + $0x38] sm:$0xf] %vm1421, %v1371
        %1437 = vst.msk [vmem:[%s253 + $0x3c] sm:$0xf] %vm1421, %v1372
        %1438 = vst.msk [vmem:[%s253 + $0x40] sm:$0xf] %vm1421, %v1373
        %1439 = vst.msk [vmem:[%s253 + $0x44] sm:$0xf] %vm1421, %v1374
        %1440 = vst.msk [vmem:[%s253 + $0x48] sm:$0xf] %vm1421, %v1375
        %1441 = vst.msk [vmem:[%s253 + $0x4c] sm:$0xf] %vm1421, %v1376
        %1442 = vst.msk [vmem:[%s253 + $0x50] sm:$0xf] %vm1421, %v1377
        %1443 = vst.msk [vmem:[%s253 + $0x54] sm:$0xf] %vm1421, %v1378
        %1444 = vst.msk [vmem:[%s253 + $0x58] sm:$0xf] %vm1421, %v1379
        %1445 = vst.msk [vmem:[%s253 + $0x5c] sm:$0xf] %vm1421, %v1380
        %1446 = vst.msk [vmem:[%s253 + $0x60] sm:$0xf] %vm1421, %v1381
        %1447 = vst.msk [vmem:[%s253 + $0x64] sm:$0xf] %vm1421, %v1382
        %1448 = vst.msk [vmem:[%s253 + $0x68] sm:$0xf] %vm1421, %v1383
        %1449 = vst.msk [vmem:[%s253 + $0x6c] sm:$0xf] %vm1421, %v1384
        %1450 = vst.msk [vmem:[%s253 + $0x70] sm:$0xf] %vm1421, %v1385
        %1451 = vst.msk [vmem:[%s253 + $0x74] sm:$0xf] %vm1421, %v1386
        %1452 = vst.msk [vmem:[%s253 + $0x78] sm:$0xf] %vm1421, %v1387
        %1453 = vst.msk [vmem:[%s253 + $0x7c] sm:$0xf] %vm1421, %v1388
        %1454 = vst.msk [vmem:[%s253 + $0x80] sm:$0xf] %vm1421, %v1389
        %1455 = vst.msk [vmem:[%s253 + $0x84] sm:$0xf] %vm1421, %v1390
        %1456 = vst.msk [vmem:[%s253 + $0x88] sm:$0xf] %vm1421, %v1391
        %1457 = vst.msk [vmem:[%s253 + $0x8c] sm:$0xf] %vm1421, %v1392
        %1458 = vst.msk [vmem:[%s253 + $0x90] sm:$0xf] %vm1421, %v1393
        %1459 = vst.msk [vmem:[%s253 + $0x94] sm:$0xf] %vm1421, %v1394
        %1460 = vst.msk [vmem:[%s253 + $0x98] sm:$0xf] %vm1421, %v1395
        %1461 = vst.msk [vmem:[%s253 + $0x9c] sm:$0xf] %vm1421, %v1396
        %1462 = vst.msk [vmem:[%s253 + $0xa0] sm:$0xf] %vm1421, %v1397
        %1463 = vst.msk [vmem:[%s253 + $0xa4] sm:$0xf] %vm1421, %v1398
        %1464 = vst.msk [vmem:[%s253 + $0xa8] sm:$0xf] %vm1421, %v1399
        %1465 = vst.msk [vmem:[%s253 + $0xac] sm:$0xf] %vm1421, %v1400
        %1466 = vst.msk [vmem:[%s253 + $0xb0] sm:$0xf] %vm1421, %v1401
        %1467 = vst.msk [vmem:[%s253 + $0xb4] sm:$0xf] %vm1421, %v1402
        %1468 = vst.msk [vmem:[%s253 + $0xb8] sm:$0xf] %vm1421, %v1403
        %1469 = vst.msk [vmem:[%s253 + $0xbc] sm:$0xf] %vm1421, %v1404
        %1470 = vst.msk [vmem:[%s253 + $0xc0] sm:$0xf] %vm1421, %v1405
        %1471 = vst.msk [vmem:[%s253 + $0xc4] sm:$0xf] %vm1421, %v1406
        %1472 = vst.msk [vmem:[%s253 + $0xc8] sm:$0xf] %vm1421, %v1407
        %1473 = vst.msk [vmem:[%s253 + $0xcc] sm:$0xf] %vm1421, %v1408
        %1474 = vst.msk [vmem:[%s253 + $0xd0] sm:$0xf] %vm1421, %v1409
        %1475 = vst.msk [vmem:[%s253 + $0xd4] sm:$0xf] %vm1421, %v1410
        %1476 = vst.msk [vmem:[%s253 + $0xd8] sm:$0xf] %vm1421, %v1411
        %1477 = vst.msk [vmem:[%s253 + $0xdc] sm:$0xf] %vm1421, %v1412
        %1478 = vst.msk [vmem:[%s253 + $0xe0] sm:$0xf] %vm1421, %v1413
        %1479 = vst.msk [vmem:[%s253 + $0xe4] sm:$0xf] %vm1421, %v1414
        %1480 = vst.msk [vmem:[%s253 + $0xe8] sm:$0xf] %vm1421, %v1415
        %1481 = vst.msk [vmem:[%s253 + $0xec] sm:$0xf] %vm1421, %v1416
        %1482 = vst.msk [vmem:[%s253 + $0xf0] sm:$0xf] %vm1421, %v1417
        %1483 = vst.msk [vmem:[%s253 + $0xf4] sm:$0xf] %vm1421, %v1418
        %1484 = vst.msk [vmem:[%s253 + $0xf8] sm:$0xf] %vm1421, %v1419
        %1485 = vst.msk [vmem:[%s253 + $0xfc] sm:$0xf] %vm1421, %v1420
        %s1486 = sand.u32 %s141, 1
        %s1487 = sand.u32 %s141, 1
        %s1488 = smul.addr %s1487, 256
        %s1489 = scalar_lea.vmem [#allocation2], %s1488
        // Predicated region
        $region37: #{tpu_custom_call.1} parent=35 // pred_check
          %p1490 = pneg %p151
        $region38: #{tpu_custom_call.1} parent=35 // pred_check_branch
          %1492 = sbr.rel (%p1490) target = $region40
        $region39: #{tpu_custom_call.1} parent=35 // pred_region
          %s1493 = smul.u32 64, %s19
          %s1494 = ssub.s32 241, %s1493
          %p1495 = scmp.lt.s32.totalorder %s1494, 64
          %s1496 = scalar_select %p1495, %s1494, 64
          %s1497 = smul.u32 4, %s1496
          %p1498 = scmp.ne.s32.totalorder 0, %s1497
          %s1499 = sadd.s32 %s20, %s1493
          %s1500 = smul.addr %s1499, 4
          %s1501 = scalar_lea.vmem %s4, %s1500
          // Predicated region
          $region41: #{tpu_custom_call.1} parent=39 // pred_check
            %p1502 = pneg %p1498
          $region42: #{tpu_custom_call.1} parent=39 // pred_check_branch
            %1504 = sbr.rel (%p1502) target = $region44
          $region43: #{tpu_custom_call.1} parent=39 // pred_region
            // Predicated region
            $region45: #{tpu_custom_call.1} parent=43 // pred_check
              _
            $region46: #{tpu_custom_call.1} parent=43 // pred_check_branch
              %1506 = sbr.rel target = $region48
            $region47: #{tpu_custom_call.1} parent=43 // pred_region
              // Predicated region
              $region67: #{tpu_custom_call.1} parent=47 // pred_check
                _
              $region68: #{tpu_custom_call.1} parent=47 // pred_check_branch
                %1618 = sbr.rel (0) target = $region70
              $region69: #{tpu_custom_call.1} parent=47 // pred_region
                %s1620 = ssub.s32 16, 1
                %s1621 = sshrl.u32 %s1496, 5
                // While loop
                $region71: #{tpu_custom_call.1} parent=69 // loop_pre_header
                  _
                $region72: #{tpu_custom_call.1} parent=69 // loop_header
                  %s1623 = sphi 0, %s1625
                  %p1624 = scmp.ge.s32.totalorder %s1623, %s1621
                  %s1628 = sphi 0, %s1697
                  %s1629 = sphi %s1489, %s1700
                  %s1630 = sphi %s1501, %s1701
                $region73: #{tpu_custom_call.1} parent=69 // loop_header_branch
                  %1627 = sbr.rel (%p1624) target = $region77
                $region74: #{tpu_custom_call.1} parent=69 // loop_body
                  %v1631 = vld [vmem:[%s1629] sm:%s1620]
                  %1632 = vst [vmem:[%s1630] sm:%s1620] %v1631
                  %v1633 = vld [vmem:[%s1629 + $0x4] sm:%s1620]
                  %1634 = vst [vmem:[%s1630 + $0x4] sm:%s1620] %v1633
                  %v1635 = vld [vmem:[%s1629 + $0x8] sm:%s1620]
                  %1636 = vst [vmem:[%s1630 + $0x8] sm:%s1620] %v1635
                  %v1637 = vld [vmem:[%s1629 + $0xc] sm:%s1620]
                  %1638 = vst [vmem:[%s1630 + $0xc] sm:%s1620] %v1637
                  %v1639 = vld [vmem:[%s1629 + $0x10] sm:%s1620]
                  %1640 = vst [vmem:[%s1630 + $0x10] sm:%s1620] %v1639
                  %v1641 = vld [vmem:[%s1629 + $0x14] sm:%s1620]
                  %1642 = vst [vmem:[%s1630 + $0x14] sm:%s1620] %v1641
                  %v1643 = vld [vmem:[%s1629 + $0x18] sm:%s1620]
                  %1644 = vst [vmem:[%s1630 + $0x18] sm:%s1620] %v1643
                  %v1645 = vld [vmem:[%s1629 + $0x1c] sm:%s1620]
                  %1646 = vst [vmem:[%s1630 + $0x1c] sm:%s1620] %v1645
                  %v1647 = vld [vmem:[%s1629 + $0x20] sm:%s1620]
                  %1648 = vst [vmem:[%s1630 + $0x20] sm:%s1620] %v1647
                  %v1649 = vld [vmem:[%s1629 + $0x24] sm:%s1620]
                  %1650 = vst [vmem:[%s1630 + $0x24] sm:%s1620] %v1649
                  %v1651 = vld [vmem:[%s1629 + $0x28] sm:%s1620]
                  %1652 = vst [vmem:[%s1630 + $0x28] sm:%s1620] %v1651
                  %v1653 = vld [vmem:[%s1629 + $0x2c] sm:%s1620]
                  %1654 = vst [vmem:[%s1630 + $0x2c] sm:%s1620] %v1653
                  %v1655 = vld [vmem:[%s1629 + $0x30] sm:%s1620]
                  %1656 = vst [vmem:[%s1630 + $0x30] sm:%s1620] %v1655
                  %v1657 = vld [vmem:[%s1629 + $0x34] sm:%s1620]
                  %1658 = vst [vmem:[%s1630 + $0x34] sm:%s1620] %v1657
                  %v1659 = vld [vmem:[%s1629 + $0x38] sm:%s1620]
                  %1660 = vst [vmem:[%s1630 + $0x38] sm:%s1620] %v1659
                  %v1661 = vld [vmem:[%s1629 + $0x3c] sm:%s1620]
                  %1662 = vst [vmem:[%s1630 + $0x3c] sm:%s1620] %v1661
                  %v1663 = vld [vmem:[%s1629 + $0x40] sm:%s1620]
                  %1664 = vst [vmem:[%s1630 + $0x40] sm:%s1620] %v1663
                  %v1665 = vld [vmem:[%s1629 + $0x44] sm:%s1620]
                  %1666 = vst [vmem:[%s1630 + $0x44] sm:%s1620] %v1665
                  %v1667 = vld [vmem:[%s1629 + $0x48] sm:%s1620]
                  %1668 = vst [vmem:[%s1630 + $0x48] sm:%s1620] %v1667
                  %v1669 = vld [vmem:[%s1629 + $0x4c] sm:%s1620]
                  %1670 = vst [vmem:[%s1630 + $0x4c] sm:%s1620] %v1669
                  %v1671 = vld [vmem:[%s1629 + $0x50] sm:%s1620]
                  %1672 = vst [vmem:[%s1630 + $0x50] sm:%s1620] %v1671
                  %v1673 = vld [vmem:[%s1629 + $0x54] sm:%s1620]
                  %1674 = vst [vmem:[%s1630 + $0x54] sm:%s1620] %v1673
                  %v1675 = vld [vmem:[%s1629 + $0x58] sm:%s1620]
                  %1676 = vst [vmem:[%s1630 + $0x58] sm:%s1620] %v1675
                  %v1677 = vld [vmem:[%s1629 + $0x5c] sm:%s1620]
                  %1678 = vst [vmem:[%s1630 + $0x5c] sm:%s1620] %v1677
                  %v1679 = vld [vmem:[%s1629 + $0x60] sm:%s1620]
                  %1680 = vst [vmem:[%s1630 + $0x60] sm:%s1620] %v1679
                  %v1681 = vld [vmem:[%s1629 + $0x64] sm:%s1620]
                  %1682 = vst [vmem:[%s1630 + $0x64] sm:%s1620] %v1681
                  %v1683 = vld [vmem:[%s1629 + $0x68] sm:%s1620]
                  %1684 = vst [vmem:[%s1630 + $0x68] sm:%s1620] %v1683
                  %v1685 = vld [vmem:[%s1629 + $0x6c] sm:%s1620]
                  %1686 = vst [vmem:[%s1630 + $0x6c] sm:%s1620] %v1685
                  %v1687 = vld [vmem:[%s1629 + $0x70] sm:%s1620]
                  %1688 = vst [vmem:[%s1630 + $0x70] sm:%s1620] %v1687
                  %v1689 = vld [vmem:[%s1629 + $0x74] sm:%s1620]
                  %1690 = vst [vmem:[%s1630 + $0x74] sm:%s1620] %v1689
                  %v1691 = vld [vmem:[%s1629 + $0x78] sm:%s1620]
                  %1692 = vst [vmem:[%s1630 + $0x78] sm:%s1620] %v1691
                  %v1693 = vld [vmem:[%s1629 + $0x7c] sm:%s1620]
                  %1694 = vst [vmem:[%s1630 + $0x7c] sm:%s1620] %v1693
                  %s1695 = sadd.s32 1, %s1628
                  %p1696 = scmp.ge.s32.totalorder %s1695, %s1621
                  %s1697 = scalar_select %p1696, 0, %s1695
                  %s1698 = smul.u32 %s1697, 128
                  %s1699 = smul.u32 %s1697, 128
                  %s1700 = scalar_lea.vmem %s1489, %s1698 [#allocation2]
                  %s1701 = scalar_lea.vmem %s1501, %s1699
                $region75: #{tpu_custom_call.1} parent=69 // loop_footer
                  %s1625 = sadd.s32 %s1623, 1
                $region76: #{tpu_custom_call.1} parent=69 // loop_footer_branch
                  %1622 = sbr.rel target = $region72
                $region77: #{tpu_custom_call.1} parent=69 // loop_exit
                  _
                %s1702 = sshrl.u32 %s1496, 5
                %s1703 = sand.u32 %s1496, 31
                %s1704 = smul.u32 %s1702, 32
                %s1705 = smul.u32 4, %s1704
                %s1706 = scalar_lea.vmem %s1489, %s1705 [#allocation2]
                %s1707 = smul.u32 4, %s1704
                %s1708 = scalar_lea.vmem %s1501, %s1707
                // While loop
                $region78: #{tpu_custom_call.1} parent=69 // loop_pre_header
                  _
                $region79: #{tpu_custom_call.1} parent=69 // loop_header
                  %s1710 = sphi 0, %s1712
                  %p1711 = scmp.ge.s32.totalorder %s1710, %s1703
                  %s1715 = sphi 0, %s1722
                  %s1716 = sphi %s1706, %s1725
                  %s1717 = sphi %s1708, %s1726
                $region80: #{tpu_custom_call.1} parent=69 // loop_header_branch
                  %1714 = sbr.rel (%p1711) target = $region84
                $region81: #{tpu_custom_call.1} parent=69 // loop_body
                  %v1718 = vld [vmem:[%s1716] sm:%s1620]
                  %1719 = vst [vmem:[%s1717] sm:%s1620] %v1718
                  %s1720 = sadd.s32 1, %s1715
                  %p1721 = scmp.ge.s32.totalorder %s1720, %s1703
                  %s1722 = scalar_select %p1721, 0, %s1720
                  %s1723 = smul.u32 %s1722, 4
                  %s1724 = smul.u32 %s1722, 4
                  %s1725 = scalar_lea.vmem %s1706, %s1723 [#allocation2]
                  %s1726 = scalar_lea.vmem %s1708, %s1724
                $region82: #{tpu_custom_call.1} parent=69 // loop_footer
                  %s1712 = sadd.s32 %s1710, 1
                $region83: #{tpu_custom_call.1} parent=69 // loop_footer_branch
                  %1709 = sbr.rel target = $region79
                $region84: #{tpu_custom_call.1} parent=69 // loop_exit
                  _
              $region70: #{tpu_custom_call.1} parent=47 // pred_fallthru
                _
            $region48: #{tpu_custom_call.1} parent=43 // pred_fallthru
              _
            // Predicated region
            $region49: #{tpu_custom_call.1} parent=43 // pred_check
              _
            $region50: #{tpu_custom_call.1} parent=43 // pred_check_branch
              %1508 = sbr.rel (0) target = $region52
            $region51: #{tpu_custom_call.1} parent=43 // pred_region
              %s1510 = ssub.s32 16, 1
              %s1511 = sshrl.u32 %s1496, 5
              // While loop
              $region53: #{tpu_custom_call.1} parent=51 // loop_pre_header
                _
              $region54: #{tpu_custom_call.1} parent=51 // loop_header
                %s1513 = sphi 0, %s1515
                %p1514 = scmp.ge.s32.totalorder %s1513, %s1511
                %s1518 = sphi 0, %s1587
                %s1519 = sphi %s1489, %s1590
                %s1520 = sphi %s1501, %s1591
              $region55: #{tpu_custom_call.1} parent=51 // loop_header_branch
                %1517 = sbr.rel (%p1514) target = $region59
              $region56: #{tpu_custom_call.1} parent=51 // loop_body
                %v1521 = vld [vmem:[%s1519] sm:%s1510]
                %1522 = vst [vmem:[%s1520] sm:%s1510] %v1521
                %v1523 = vld [vmem:[%s1519 + $0x4] sm:%s1510]
                %1524 = vst [vmem:[%s1520 + $0x4] sm:%s1510] %v1523
                %v1525 = vld [vmem:[%s1519 + $0x8] sm:%s1510]
                %1526 = vst [vmem:[%s1520 + $0x8] sm:%s1510] %v1525
                %v1527 = vld [vmem:[%s1519 + $0xc] sm:%s1510]
                %1528 = vst [vmem:[%s1520 + $0xc] sm:%s1510] %v1527
                %v1529 = vld [vmem:[%s1519 + $0x10] sm:%s1510]
                %1530 = vst [vmem:[%s1520 + $0x10] sm:%s1510] %v1529
                %v1531 = vld [vmem:[%s1519 + $0x14] sm:%s1510]
                %1532 = vst [vmem:[%s1520 + $0x14] sm:%s1510] %v1531
                %v1533 = vld [vmem:[%s1519 + $0x18] sm:%s1510]
                %1534 = vst [vmem:[%s1520 + $0x18] sm:%s1510] %v1533
                %v1535 = vld [vmem:[%s1519 + $0x1c] sm:%s1510]
                %1536 = vst [vmem:[%s1520 + $0x1c] sm:%s1510] %v1535
                %v1537 = vld [vmem:[%s1519 + $0x20] sm:%s1510]
                %1538 = vst [vmem:[%s1520 + $0x20] sm:%s1510] %v1537
                %v1539 = vld [vmem:[%s1519 + $0x24] sm:%s1510]
                %1540 = vst [vmem:[%s1520 + $0x24] sm:%s1510] %v1539
                %v1541 = vld [vmem:[%s1519 + $0x28] sm:%s1510]
                %1542 = vst [vmem:[%s1520 + $0x28] sm:%s1510] %v1541
                %v1543 = vld [vmem:[%s1519 + $0x2c] sm:%s1510]
                %1544 = vst [vmem:[%s1520 + $0x2c] sm:%s1510] %v1543
                %v1545 = vld [vmem:[%s1519 + $0x30] sm:%s1510]
                %1546 = vst [vmem:[%s1520 + $0x30] sm:%s1510] %v1545
                %v1547 = vld [vmem:[%s1519 + $0x34] sm:%s1510]
                %1548 = vst [vmem:[%s1520 + $0x34] sm:%s1510] %v1547
                %v1549 = vld [vmem:[%s1519 + $0x38] sm:%s1510]
                %1550 = vst [vmem:[%s1520 + $0x38] sm:%s1510] %v1549
                %v1551 = vld [vmem:[%s1519 + $0x3c] sm:%s1510]
                %1552 = vst [vmem:[%s1520 + $0x3c] sm:%s1510] %v1551
                %v1553 = vld [vmem:[%s1519 + $0x40] sm:%s1510]
                %1554 = vst [vmem:[%s1520 + $0x40] sm:%s1510] %v1553
                %v1555 = vld [vmem:[%s1519 + $0x44] sm:%s1510]
                %1556 = vst [vmem:[%s1520 + $0x44] sm:%s1510] %v1555
                %v1557 = vld [vmem:[%s1519 + $0x48] sm:%s1510]
                %1558 = vst [vmem:[%s1520 + $0x48] sm:%s1510] %v1557
                %v1559 = vld [vmem:[%s1519 + $0x4c] sm:%s1510]
                %1560 = vst [vmem:[%s1520 + $0x4c] sm:%s1510] %v1559
                %v1561 = vld [vmem:[%s1519 + $0x50] sm:%s1510]
                %1562 = vst [vmem:[%s1520 + $0x50] sm:%s1510] %v1561
                %v1563 = vld [vmem:[%s1519 + $0x54] sm:%s1510]
                %1564 = vst [vmem:[%s1520 + $0x54] sm:%s1510] %v1563
                %v1565 = vld [vmem:[%s1519 + $0x58] sm:%s1510]
                %1566 = vst [vmem:[%s1520 + $0x58] sm:%s1510] %v1565
                %v1567 = vld [vmem:[%s1519 + $0x5c] sm:%s1510]
                %1568 = vst [vmem:[%s1520 + $0x5c] sm:%s1510] %v1567
                %v1569 = vld [vmem:[%s1519 + $0x60] sm:%s1510]
                %1570 = vst [vmem:[%s1520 + $0x60] sm:%s1510] %v1569
                %v1571 = vld [vmem:[%s1519 + $0x64] sm:%s1510]
                %1572 = vst [vmem:[%s1520 + $0x64] sm:%s1510] %v1571
                %v1573 = vld [vmem:[%s1519 + $0x68] sm:%s1510]
                %1574 = vst [vmem:[%s1520 + $0x68] sm:%s1510] %v1573
                %v1575 = vld [vmem:[%s1519 + $0x6c] sm:%s1510]
                %1576 = vst [vmem:[%s1520 + $0x6c] sm:%s1510] %v1575
                %v1577 = vld [vmem:[%s1519 + $0x70] sm:%s1510]
                %1578 = vst [vmem:[%s1520 + $0x70] sm:%s1510] %v1577
                %v1579 = vld [vmem:[%s1519 + $0x74] sm:%s1510]
                %1580 = vst [vmem:[%s1520 + $0x74] sm:%s1510] %v1579
                %v1581 = vld [vmem:[%s1519 + $0x78] sm:%s1510]
                %1582 = vst [vmem:[%s1520 + $0x78] sm:%s1510] %v1581
                %v1583 = vld [vmem:[%s1519 + $0x7c] sm:%s1510]
                %1584 = vst [vmem:[%s1520 + $0x7c] sm:%s1510] %v1583
                %s1585 = sadd.s32 1, %s1518
                %p1586 = scmp.ge.s32.totalorder %s1585, %s1511
                %s1587 = scalar_select %p1586, 0, %s1585
                %s1588 = smul.u32 %s1587, 128
                %s1589 = smul.u32 %s1587, 128
                %s1590 = scalar_lea.vmem %s1489, %s1588 [#allocation2]
                %s1591 = scalar_lea.vmem %s1501, %s1589
              $region57: #{tpu_custom_call.1} parent=51 // loop_footer
                %s1515 = sadd.s32 %s1513, 1
              $region58: #{tpu_custom_call.1} parent=51 // loop_footer_branch
                %1512 = sbr.rel target = $region54
              $region59: #{tpu_custom_call.1} parent=51 // loop_exit
                _
              %s1592 = sshrl.u32 %s1496, 5
              %s1593 = sand.u32 %s1496, 31
              %s1594 = smul.u32 %s1592, 32
              %s1595 = smul.u32 4, %s1594
              %s1596 = scalar_lea.vmem %s1489, %s1595 [#allocation2]
              %s1597 = smul.u32 4, %s1594
              %s1598 = scalar_lea.vmem %s1501, %s1597
              // While loop
              $region60: #{tpu_custom_call.1} parent=51 // loop_pre_header
                _
              $region61: #{tpu_custom_call.1} parent=51 // loop_header
                %s1600 = sphi 0, %s1602
                %p1601 = scmp.ge.s32.totalorder %s1600, %s1593
                %s1605 = sphi 0, %s1612
                %s1606 = sphi %s1596, %s1615
                %s1607 = sphi %s1598, %s1616
              $region62: #{tpu_custom_call.1} parent=51 // loop_header_branch
                %1604 = sbr.rel (%p1601) target = $region66
              $region63: #{tpu_custom_call.1} parent=51 // loop_body
                %v1608 = vld [vmem:[%s1606] sm:%s1510]
                %1609 = vst [vmem:[%s1607] sm:%s1510] %v1608
                %s1610 = sadd.s32 1, %s1605
                %p1611 = scmp.ge.s32.totalorder %s1610, %s1593
                %s1612 = scalar_select %p1611, 0, %s1610
                %s1613 = smul.u32 %s1612, 4
                %s1614 = smul.u32 %s1612, 4
                %s1615 = scalar_lea.vmem %s1596, %s1613 [#allocation2]
                %s1616 = scalar_lea.vmem %s1598, %s1614
              $region64: #{tpu_custom_call.1} parent=51 // loop_footer
                %s1602 = sadd.s32 %s1600, 1
              $region65: #{tpu_custom_call.1} parent=51 // loop_footer_branch
                %1599 = sbr.rel target = $region61
              $region66: #{tpu_custom_call.1} parent=51 // loop_exit
                _
            $region52: #{tpu_custom_call.1} parent=43 // pred_fallthru
              _
          $region44: #{tpu_custom_call.1} parent=39 // pred_fallthru
            _
          %1727 = vnop
        $region40: #{tpu_custom_call.1} parent=35 // pred_fallthru
          _
      $region36: #{tpu_custom_call.1} parent=5 // pred_fallthru
        _
      %p1728 = scmp.le.s32.totalorder 2, %s10
      // Predicated region
      $region85: #{tpu_custom_call.1} parent=5 // pred_check
        %p1729 = pneg %p1728
      $region86: #{tpu_custom_call.1} parent=5 // pred_check_branch
        %1731 = sbr.rel (%p1729) target = $region88
      $region87: #{tpu_custom_call.1} parent=5 // pred_region
        %s1732 = ssub.s32 %s10, 2
        // Predicated region
        $region89: #{tpu_custom_call.1} parent=87 // pred_check
          %p1733 = pneg %p157
        $region90: #{tpu_custom_call.1} parent=87 // pred_check_branch
          %1735 = sbr.rel (%p1733) target = $region92
        $region91: #{tpu_custom_call.1} parent=87 // pred_region
          %s1736 = sand.u32 %s142, 1
          %s1737 = sand.u32 %s142, 1
          %s1738 = smul.addr %s1737, 256
          %s1739 = scalar_lea.vmem [#allocation2], %s1738
        $region92: #{tpu_custom_call.1} parent=87 // pred_fallthru
          _
      $region88: #{tpu_custom_call.1} parent=5 // pred_fallthru
        _
    $region6: #{tpu_custom_call.1} parent=1 // loop_footer
      %s14 = sadd.s32 1, %s10
    $region7: #{tpu_custom_call.1} parent=1 // loop_footer_branch
      %9 = sbr.rel target = $region3
    $region8: #{tpu_custom_call.1} parent=1 // loop_exit
      _

</llo_original>
